<compile_context>
chip_gen: v7x
topology: tpu7x:2x2x1
jax: 0.10.0
libtpu: 0.0.40
codegen_flags: <defaults>
</compile_context>

<pallas_src>
import functools
import math

import jax
import jax.numpy as jnp
from jax import lax
from jax.experimental import pallas as pl
from jax.experimental.pallas import tpu as pltpu


# ---------------- small helpers ----------------

def _round_up(x, m):
    return ((x + m - 1) // m) * m


def _lcm(a, b):
    return a * b // math.gcd(a, b)


def _vmem_budget_bytes():
    cap = 64 * 1024 * 1024            # conservative fallback (v7x per-core VMEM)
    try:
        info = pltpu.get_tpu_info()
        cap = int(getattr(info, "vmem_capacity_bytes", cap))
    except Exception:
        pass
    return min(int(cap * 3 // 4), 96 * 1024 * 1024)


def _largest_div_tile(kpad, cap):
    """Largest multiple of 128 that divides kpad (kpad % 128 == 0) and is <= cap."""
    q = kpad // 128
    best = 1
    for d in range(1, q + 1):
        if q % d == 0 and 128 * d <= cap:
            best = d
    return 128 * best


def _choose_tiles(mrows, hw, kpad, npad, budget, *, max_tm=None, max_tk=None):
    l = _lcm(hw, 8)                   # squash slabs must hold whole batch images
    tn = min(npad, 256)
    if 2 * kpad * tn * 2 > budget // 2 and tn > 128:
        tn = 128                      # keep the resident weight block within ~half the budget
    tk_cap = min(kpad, 4096 if max_tk is None else max(128, max_tk))
    tk = _largest_div_tile(kpad, tk_cap)
    # per row of an M tile: double-buffered bf16 patches + f32 acc + double-buffered bf16 out
    per_row = 4 * tk + 8 * tn
    avail = max(budget - 2 * (2 * kpad * tn) - 8 * tn, per_row * l)
    tm_budget = max(l, (avail // per_row) // l * l)
    tm_user = _round_up(min(1024 if max_tm is None else max_tm, mrows + l), l)
    tm = max(l, min(_round_up(mrows, l), tm_budget, tm_user))
    return tm, tk, tn


# ---------------- Pallas kernels (hot path) ----------------

_EPS = 1e-8
_UNIT_LANES = 128   # lane-padded "unit" axis used by the selector matmuls


def _squash_scale(x, grp, unit, unit_t):
    """squash() applied to conv activations x laid out as rows=(b,ho,wo), cols=(u,o).

    x      : (R, Npad)  f32
    grp    : (R, R)     f32 0/1, grp[r, r'] = 1 iff rows r, r' belong to the same image
    unit   : (Npad, 128) f32 0/1, unit[c, u] = 1 iff column c belongs to capsule unit u
    unit_t : (128, Npad) = unit.T
    Per-capsule |s|^2 is accumulated with two small selector matmuls on the MXU, the squash
    factor is computed on the EUP (rsqrt + approx reciprocal) and broadcast back the same way.
    """
    ss = x * x
    su = jnp.dot(ss, unit, preferred_element_type=jnp.float32)    # (R, 128): per-row sum over o
    sq = jnp.dot(grp, su, preferred_element_type=jnp.float32)     # (R, 128): per-capsule |s|^2
    f = sq * lax.rsqrt(sq + _EPS) * pl.reciprocal(1.0 + sq, approx=True)
    return x * jnp.dot(f, unit_t, preferred_element_type=jnp.float32)


def _fused_primarycaps_kernel(x_ref, w_ref, b_ref, grp_ref, unit_ref, unit_t_ref, o_ref):
    """Small-problem fast path: conv-as-matmul + bias + squash in a single grid step."""
    conv = jnp.dot(x_ref[...], w_ref[...], preferred_element_type=jnp.float32) + b_ref[...]
    o_ref[...] = _squash_scale(conv, grp_ref[...], unit_ref[...], unit_t_ref[...])


def _conv_single_kernel(x_ref, w_ref, b_ref, o_ref):
    """Tiled conv matmul with the whole K reduction inside one grid step (resident weight)."""
    o_ref[...] = (jnp.dot(x_ref[...], w_ref[...], preferred_element_type=jnp.float32)
                  + b_ref[...]).astype(o_ref.dtype)


def _conv_acc_kernel(x_ref, w_ref, b_ref, o_ref, acc_ref, *, tk):
    """Tiled conv matmul with a K grid axis; the weight stays VMEM-resident and is sliced."""
    @pl.when(pl.program_id(2) == 0)
    def _init():
        acc_ref[...] = jnp.zeros_like(acc_ref)

    koff = pl.multiple_of(pl.program_id(2) * tk, 128)
    acc_ref[...] += jnp.dot(x_ref[...], w_ref[pl.ds(koff, tk), :],
                            preferred_element_type=jnp.float32)

    @pl.when(pl.program_id(2) == pl.num_programs(2) - 1)
    def _finalize():
        o_ref[...] = (acc_ref[...] + b_ref[...]).astype(o_ref.dtype)


def _squash_kernel(x_ref, grp_ref, unit_ref, unit_t_ref, o_ref):
    """Squash a (tr, Npad) slab of bf16 conv activations (tr holds whole batch images)."""
    o_ref[...] = _squash_scale(x_ref[...].astype(jnp.float32),
                               grp_ref[...], unit_ref[...], unit_t_ref[...])


# ---------------- host-side glue ----------------

def _im2col(x, k, stride, ho, wo):
    """(B,C,H,W) -> (B*Ho*Wo, C*K*K) bf16 patches with feature order (c, kh, kw)."""
    b, c = x.shape[0], x.shape[1]
    cols = []
    for i in range(k):
        for j in range(k):
            cols.append(x[:, :, i:i + stride * ho:stride, j:j + stride * wo:stride])
    cols = jnp.stack(cols, axis=0).reshape(k, k, b, c, ho, wo)
    # f32 -> bf16 cast folded into the patch materialization (no standalone copy of x).
    return cols.transpose(2, 4, 5, 3, 0, 1).reshape(b * ho * wo, c * k * k).astype(jnp.bfloat16)
    # TODO(synk): move the patch gather into the kernel (scalar-prefetched offsets /
    # pl.Element index_map) to avoid the ~K^2/stride^2 HBM expansion at production sizes.


def _unit_selectors(npad, n, out_size):
    c = jnp.arange(npad)
    u = jnp.arange(_UNIT_LANES)
    unit = (((c[:, None] // out_size) == u[None, :]) & (c[:, None] < n)).astype(jnp.float32)
    return unit, unit.T


def _group_selector(rows, hw):
    r = jnp.arange(rows)
    return ((r[:, None] // hw) == (r[None, :] // hw)).astype(jnp.float32)


# ---------------- wrapper ----------------

def primary_caps_forward(x, weight, bias, *, kernel_size, stride, n_units, out_size,
                         path="auto", _max_tm=None, _max_tk=None):
    """x: (B, in_size, H, W) f32. weight: (n_units*out_size, in_size, K, K), bias: (N,).

    Returns (B, out_size*Ho*Wo, n_units) f32.
    """
    B, C, H, W = x.shape
    K = kernel_size
    Ho = (H - K) // stride + 1
    Wo = (W - K) // stride + 1
    HW = Ho * Wo
    N = n_units * out_size
    Mrows = B * HW
    Kdim = C * K * K

    budget = _vmem_budget_bytes()
    Kpad = _round_up(Kdim, 128)      # no ragged / oversized zero K padding
    Npad = _round_up(N, 256)         # lane-dense + full 256-wide MXU columns on v6e/v7x

    patches = _im2col(x, K, stride, Ho, Wo)                                   # (Mrows, Kdim) bf16
    w2d = jnp.pad(weight.reshape(N, Kdim).T.astype(jnp.bfloat16),
                  ((0, Kpad - Kdim), (0, Npad - N)))                          # (Kpad, Npad) bf16
    b2d = jnp.pad(bias.astype(jnp.float32).reshape(1, N), ((0, 0), (0, Npad - N)))
    unit, unit_t = _unit_selectors(Npad, N, out_size)

    # ---- path choice: one fully fused single-step kernel when everything fits in VMEM ----
    Mp = _round_up(Mrows, 8)
    fused_bytes = (2 * (Mp * Kpad * 2 + Kpad * Npad * 2 + Npad * 4
                        + 2 * Npad * _UNIT_LANES * 4 + Mp * Mp * 4)
                   + 12 * Mp * Npad * 4)
    use_fused = (path == "fused") or (path == "auto"
                                      and fused_bytes <= min(budget, 32 * 1024 * 1024))

    if use_fused:
        xp = jnp.pad(patches, ((0, Mp - Mrows), (0, Kpad - Kdim)))
        grp = _group_selector(Mp, HW)
        squashed = pl.pallas_call(
            _fused_primarycaps_kernel,
            out_shape=jax.ShapeDtypeStruct((Mp, Npad), jnp.float32),
            grid=(1,),
            in_specs=[
                pl.BlockSpec((Mp, Kpad), lambda i: (0, 0)),
                pl.BlockSpec((Kpad, Npad), lambda i: (0, 0)),
                pl.BlockSpec((1, Npad), lambda i: (0, 0)),
                pl.BlockSpec((Mp, Mp), lambda i: (0, 0)),
                pl.BlockSpec((Npad, _UNIT_LANES), lambda i: (0, 0)),
                pl.BlockSpec((_UNIT_LANES, Npad), lambda i: (0, 0)),
            ],
            out_specs=pl.BlockSpec((Mp, Npad), lambda i: (0, 0)),
            compiler_params=pltpu.CompilerParams(
                dimension_semantics=("arbitrary",),
                vmem_limit_bytes=budget),
        )(xp, w2d, b2d, grp, unit, unit_t)
    else:
        tm, tk, tn = _choose_tiles(Mrows, HW, Kpad, Npad, budget,
                                   max_tm=_max_tm, max_tk=_max_tk)
        Mpad = _round_up(Mrows, tm)
        Kt = Kpad // tk
        xp = jnp.pad(patches, ((0, Mpad - Mrows), (0, Kpad - Kdim)))

        if Kt == 1:
            conv_kernel, scratch = _conv_single_kernel, []
        else:
            conv_kernel = functools.partial(_conv_acc_kernel, tk=tk)
            scratch = [pltpu.VMEM((tm, tn), jnp.float32)]

        conv_out = pl.pallas_call(
            conv_kernel,
            out_shape=jax.ShapeDtypeStruct((Mpad, Npad), jnp.bfloat16),   # bf16 intermediate
            grid=(Mpad // tm, Npad // tn, Kt),
            in_specs=[
                pl.BlockSpec((tm, tk), lambda m, n, k: (m, k)),
                # fused weight stays VMEM-resident across the m / k grid axes
                pl.BlockSpec((Kpad, tn), lambda m, n, k: (0, n)),
                pl.BlockSpec((1, tn), lambda m, n, k: (0, n)),
            ],
            out_specs=pl.BlockSpec((tm, tn), lambda m, n, k: (m, n)),
            scratch_shapes=scratch,
            compiler_params=pltpu.CompilerParams(
                dimension_semantics=("parallel", "parallel", "arbitrary"),
                vmem_limit_bytes=budget),
        )(xp, w2d, b2d)

        # Squash directly on the (b*hw, u*o) conv layout: each (tm, Npad) slab holds whole
        # batch images (tm % HW == 0), so per-capsule |s|^2 is block-local -- no XLA
        # transpose / re-read of the intermediate between the two kernels.
        grp = _group_selector(tm, HW)
        squashed = pl.pallas_call(
            _squash_kernel,
            out_shape=jax.ShapeDtypeStruct((Mpad, Npad), jnp.float32),
            grid=(Mpad // tm,),
            in_specs=[
                pl.BlockSpec((tm, Npad), lambda r: (r, 0)),
                pl.BlockSpec((tm, tm), lambda r: (0, 0)),
                pl.BlockSpec((Npad, _UNIT_LANES), lambda r: (0, 0)),
                pl.BlockSpec((_UNIT_LANES, Npad), lambda r: (0, 0)),
            ],
            out_specs=pl.BlockSpec((tm, Npad), lambda r: (r, 0)),
            compiler_params=pltpu.CompilerParams(
                dimension_semantics=("parallel",),
                vmem_limit_bytes=budget),
        )(conv_out, grp, unit, unit_t)

    # rows=(b, ho, wo), cols=(u, o)  ->  (B, out_size*Ho*Wo, n_units)
    # TODO(synk): this final permute (last dim n_units < 128) stays as XLA glue on the small
    # output tensor; it cannot be stored lane-densely from the kernel.
    out2d = squashed[:Mrows, :N]
    caps = (out2d.reshape(B, HW, n_units, out_size)
            .transpose(0, 3, 1, 2)
            .reshape(B, out_size * HW, n_units))
    return caps


# ---------------- reference (plain JAX) for verification ----------------

def primary_caps_reference(x, weight, bias, *, kernel_size, stride, n_units, out_size):
    B = x.shape[0]
    y = jax.lax.conv_general_dilated(
        x, weight, (stride, stride), 'VALID',
        dimension_numbers=('NCHW', 'OIHW', 'NCHW'))
    y = y + bias.reshape(1, -1, 1, 1)
    units = y.reshape(B, n_units, -1)                # (B, n_units, out_size*Ho*Wo)
    sq = jnp.sum(units * units, axis=2, keepdims=True)
    squashed = (sq / (1.0 + sq)) * units * jax.lax.rsqrt(sq + 1e-8)
    return squashed.transpose(0, 2, 1)


if __name__ == "__main__":
    # small shapes consistent with the module: B=2, in_size=16, 16x16 spatial,
    # out_size=8, kernel 9, stride 2, n_units=8  ->  Ho=Wo=4, capsule dim 8*16=128
    B, Cin, H, W = 2, 16, 16, 16
    out_size, K, stride, n_units = 8, 9, 2, 8

    key = jax.random.PRNGKey(0)
    kx, kw, kb = jax.random.split(key, 3)
    x = jax.random.normal(kx, (B, Cin, H, W), dtype=jnp.float32)
    # n_units Conv2d layers, weights fused along output channels: (n_units*out_size, Cin, K, K)
    weight = 0.05 * jax.random.normal(kw, (n_units * out_size, Cin, K, K), dtype=jnp.float32)
    bias = 0.01 * jax.random.normal(kb, (n_units * out_size,), dtype=jnp.float32)

    common = dict(kernel_size=K, stride=stride, n_units=n_units, out_size=out_size)
    # fast path: single fused (matmul+bias+squash) step -- what small problems take by default
    fwd_fused = jax.jit(functools.partial(primary_caps_forward, path="auto", **common))
    # tiled path: VMEM-resident weight, single-K-step conv, fused in-layout squash
    fwd_tiled = jax.jit(functools.partial(primary_caps_forward, path="tiled", **common))
    # tiled path with the K-accumulator grid forced (exercises the multi-tile code path)
    fwd_tiled_acc = jax.jit(functools.partial(primary_caps_forward, path="tiled",
                                              _max_tm=16, _max_tk=128, **common))

    ref = primary_caps_reference(x, weight, bias, **common)
    Ho = (H - K) // stride + 1
    Wo = (W - K) // stride + 1

    for fwd in (fwd_fused, fwd_tiled, fwd_tiled_acc):
        out = jax.block_until_ready(fwd(x, weight, bias))
        assert out.shape == (B, out_size * Ho * Wo, n_units), out.shape
        err = float(jnp.max(jnp.abs(out - ref)))
        # bf16 MXU operands / bf16 conv intermediate / approx reciprocal => relaxed tolerance
        assert jnp.allclose(out, ref, atol=1e-2, rtol=1e-2), \
            f"mismatch vs reference (max abs err {err})"

    print("KERNEL_OK")
</pallas_src>

<mosaic_0001>
module attributes {stable_mosaic.version = 11 : i64} {
  func.func @_fused_primarycaps_kernel(%arg0: i32, %arg1: memref<32x1408xbf16, #tpu.memory_space<vmem>>, %arg2: memref<1408x256xbf16, #tpu.memory_space<vmem>>, %arg3: memref<1x256xf32, #tpu.memory_space<vmem>>, %arg4: memref<32x32xf32, #tpu.memory_space<vmem>>, %arg5: memref<256x128xf32, #tpu.memory_space<vmem>>, %arg6: memref<128x256xf32, #tpu.memory_space<vmem>>, %arg7: memref<32x256xf32, #tpu.memory_space<vmem>>) attributes {dimension_semantics = [#tpu.dimension_semantics<arbitrary>], iteration_bounds = array<i64: 1>, scalar_prefetch = 0 : i64, scratch_operands = 0 : i64, tpu.core_type = #tpu.core_type<tc>, window_params = [{pipeline_mode = #tpu.pipeline_mode<synchronous>, transform_indices = @transform_0, window_bounds = array<i64: 32, 1408>}, {pipeline_mode = #tpu.pipeline_mode<synchronous>, transform_indices = @transform_1, window_bounds = array<i64: 1408, 256>}, {pipeline_mode = #tpu.pipeline_mode<synchronous>, transform_indices = @transform_2, window_bounds = array<i64: 1, 256>}, {pipeline_mode = #tpu.pipeline_mode<synchronous>, transform_indices = @transform_3, window_bounds = array<i64: 32, 32>}, {pipeline_mode = #tpu.pipeline_mode<synchronous>, transform_indices = @transform_4, window_bounds = array<i64: 256, 128>}, {pipeline_mode = #tpu.pipeline_mode<synchronous>, transform_indices = @transform_5, window_bounds = array<i64: 128, 256>}, {pipeline_mode = #tpu.pipeline_mode<synchronous>, transform_indices = @transform_6, window_bounds = array<i64: 32, 256>}]} {
    %c0 = arith.constant 0 : index
    %c0_0 = arith.constant 0 : index
    %0 = vector.load %arg1[%c0, %c0_0] : memref<32x1408xbf16, #tpu.memory_space<vmem>>, vector<32x1408xbf16>
    %c0_1 = arith.constant 0 : index
    %c0_2 = arith.constant 0 : index
    %1 = vector.load %arg2[%c0_1, %c0_2] : memref<1408x256xbf16, #tpu.memory_space<vmem>>, vector<1408x256xbf16>
    %cst = arith.constant dense<0.000000e+00> : vector<32x256xf32>
    %2 = tpu.matmul %0, %1, %cst {dimension_numbers = #tpu.dot_dimension_numbers<[1], [0], [0], [1], [0, 0, 1, 1], [], []>} : vector<32x1408xbf16>, vector<1408x256xbf16>, vector<32x256xf32> -> vector<32x256xf32>
    %c0_3 = arith.constant 0 : index
    %c0_4 = arith.constant 0 : index
    %3 = vector.load %arg3[%c0_3, %c0_4] : memref<1x256xf32, #tpu.memory_space<vmem>>, vector<1x256xf32>
    %4 = vector.broadcast %3 : vector<1x256xf32> to vector<32x256xf32>
    %5 = arith.addf %2, %4 : vector<32x256xf32>
    %c0_5 = arith.constant 0 : index
    %c0_6 = arith.constant 0 : index
    %6 = vector.load %arg4[%c0_5, %c0_6] : memref<32x32xf32, #tpu.memory_space<vmem>>, vector<32x32xf32>
    %c0_7 = arith.constant 0 : index
    %c0_8 = arith.constant 0 : index
    %7 = vector.load %arg5[%c0_7, %c0_8] : memref<256x128xf32, #tpu.memory_space<vmem>>, vector<256x128xf32>
    %c0_9 = arith.constant 0 : index
    %c0_10 = arith.constant 0 : index
    %8 = vector.load %arg6[%c0_9, %c0_10] : memref<128x256xf32, #tpu.memory_space<vmem>>, vector<128x256xf32>
    %9 = arith.mulf %5, %5 : vector<32x256xf32>
    %cst_11 = arith.constant dense<0.000000e+00> : vector<32x128xf32>
    %10 = tpu.matmul %9, %7, %cst_11 {dimension_numbers = #tpu.dot_dimension_numbers<[1], [0], [0], [1], [0, 0, 1, 1], [], []>} : vector<32x256xf32>, vector<256x128xf32>, vector<32x128xf32> -> vector<32x128xf32>
    %cst_12 = arith.constant dense<0.000000e+00> : vector<32x128xf32>
    %11 = tpu.matmul %6, %10, %cst_12 {dimension_numbers = #tpu.dot_dimension_numbers<[1], [0], [0], [1], [0, 0, 1, 1], [], []>} : vector<32x32xf32>, vector<32x128xf32>, vector<32x128xf32> -> vector<32x128xf32>
    %cst_13 = arith.constant 9.99999993E-9 : f32
    %12 = vector.broadcast %cst_13 : f32 to vector<32x128xf32>
    %13 = arith.addf %11, %12 : vector<32x128xf32>
    %14 = math.rsqrt %13 : vector<32x128xf32>
    %15 = arith.mulf %11, %14 : vector<32x128xf32>
    %cst_14 = arith.constant 1.000000e+00 : f32
    %16 = vector.broadcast %cst_14 : f32 to vector<32x128xf32>
    %17 = arith.addf %16, %11 : vector<32x128xf32>
    %18 = tpu.reciprocal %17 {approx = true} : vector<32x128xf32> -> vector<32x128xf32>
    %19 = arith.mulf %15, %18 : vector<32x128xf32>
    %cst_15 = arith.constant dense<0.000000e+00> : vector<32x256xf32>
    %20 = tpu.matmul %19, %8, %cst_15 {dimension_numbers = #tpu.dot_dimension_numbers<[1], [0], [0], [1], [0, 0, 1, 1], [], []>} : vector<32x128xf32>, vector<128x256xf32>, vector<32x256xf32> -> vector<32x256xf32>
    %21 = arith.mulf %5, %20 : vector<32x256xf32>
    %c0_16 = arith.constant 0 : index
    %c0_17 = arith.constant 0 : index
    %22 = vector.load %arg7[%c0_16, %c0_17] : memref<32x256xf32, #tpu.memory_space<vmem>>, vector<32x256xf32>
    tpu.vector_store %arg7[%c0_16, %c0_17], %21 {strides = array<i32>} : memref<32x256xf32, #tpu.memory_space<vmem>>, vector<32x256xf32>,
    return
  }
  func.func @transform_0(%arg0: i32) -> (i32, i32) {
    %c0_i32 = arith.constant 0 : i32
    %c0_i32_0 = arith.constant 0 : i32
    %c0_i32_1 = arith.constant 0 : i32
    return %c0_i32, %c0_i32_0 : i32, i32
  }
  func.func @transform_1(%arg0: i32) -> (i32, i32) {
    %c0_i32 = arith.constant 0 : i32
    %c0_i32_0 = arith.constant 0 : i32
    %c0_i32_1 = arith.constant 0 : i32
    return %c0_i32, %c0_i32_0 : i32, i32
  }
  func.func @transform_2(%arg0: i32) -> (i32, i32) {
    %c0_i32 = arith.constant 0 : i32
    %c0_i32_0 = arith.constant 0 : i32
    %c0_i32_1 = arith.constant 0 : i32
    return %c0_i32, %c0_i32_0 : i32, i32
  }
  func.func @transform_3(%arg0: i32) -> (i32, i32) {
    %c0_i32 = arith.constant 0 : i32
    %c0_i32_0 = arith.constant 0 : i32
    %c0_i32_1 = arith.constant 0 : i32
    return %c0_i32, %c0_i32_0 : i32, i32
  }
  func.func @transform_4(%arg0: i32) -> (i32, i32) {
    %c0_i32 = arith.constant 0 : i32
    %c0_i32_0 = arith.constant 0 : i32
    %c0_i32_1 = arith.constant 0 : i32
    return %c0_i32, %c0_i32_0 : i32, i32
  }
  func.func @transform_5(%arg0: i32) -> (i32, i32) {
    %c0_i32 = arith.constant 0 : i32
    %c0_i32_0 = arith.constant 0 : i32
    %c0_i32_1 = arith.constant 0 : i32
    return %c0_i32, %c0_i32_0 : i32, i32
  }
  func.func @transform_6(%arg0: i32) -> (i32, i32) {
    %c0_i32 = arith.constant 0 : i32
    %c0_i32_0 = arith.constant 0 : i32
    %c0_i32_1 = arith.constant 0 : i32
    return %c0_i32, %c0_i32_0 : i32, i32
  }
}

</mosaic_0001>

<llo_original>
// kernel: primary_caps_forward.1
$region0: #{primary_caps_forward.1}
  #allocation0 [shape = 'u32[]', space=smem, size = 0x4, offset = 0x4, fixed_abs, tag = 'smem constant byte address 0x4 - core index']
  #allocation1 [shape = 'u32[144,128]{1,0:T(1,128)}', space=vmem, size = 0x12000, scoped, tag = 'internal scratch']
  %s0 = inlined_call_operand.vmem [shape: bf16[32,1408], index: 0, kind: input, shape index: {}]
  %s1 = inlined_call_operand.vmem [shape: bf16[1408,256], index: 1, kind: input, shape index: {}]
  %s2 = inlined_call_operand.vmem [shape: f32[1,256], index: 2, kind: input, shape index: {}]
  %s3 = inlined_call_operand.vmem [shape: f32[32,32], index: 3, kind: input, shape index: {}]
  %s4 = inlined_call_operand.vmem [shape: f32[256,128], index: 4, kind: input, shape index: {}]
  %s5 = inlined_call_operand.vmem [shape: f32[128,256], index: 5, kind: input, shape index: {}]
  %s6 = inlined_call_operand.vmem [shape: f32[32,256], index: 6, kind: output, shape index: {}]
  %s7 = sld [smem:[#allocation0]]
  $region34: #{primary_caps_forward.1} parent=0
    _
  %s9 = ssub.s32 1, %s7
  %s10 = scalar_select 0, %s9, %s7
  // Predicated region
  $region2: #{primary_caps_forward.1} parent=0 // pred_check
    _
  $region3: #{primary_caps_forward.1} parent=0 // pred_check_branch
    %12 = sbr.rel (0) target = $region5
  $region4: #{primary_caps_forward.1} parent=0 // pred_region
    _
  $region5: #{primary_caps_forward.1} parent=0 // pred_fallthru
    _
  // Predicated region
  $region6: #{primary_caps_forward.1} parent=0 // pred_check
    _
  $region7: #{primary_caps_forward.1} parent=0 // pred_check_branch
    %14 = sbr.rel (0) target = $region9
  $region8: #{primary_caps_forward.1} parent=0 // pred_region
    _
  $region9: #{primary_caps_forward.1} parent=0 // pred_fallthru
    _
  // Predicated region
  $region10: #{primary_caps_forward.1} parent=0 // pred_check
    _
  $region11: #{primary_caps_forward.1} parent=0 // pred_check_branch
    %16 = sbr.rel (0) target = $region13
  $region12: #{primary_caps_forward.1} parent=0 // pred_region
    _
  $region13: #{primary_caps_forward.1} parent=0 // pred_fallthru
    _
  // Predicated region
  $region14: #{primary_caps_forward.1} parent=0 // pred_check
    _
  $region15: #{primary_caps_forward.1} parent=0 // pred_check_branch
    %18 = sbr.rel (0) target = $region17
  $region16: #{primary_caps_forward.1} parent=0 // pred_region
    _
  $region17: #{primary_caps_forward.1} parent=0 // pred_fallthru
    _
  // Predicated region
  $region18: #{primary_caps_forward.1} parent=0 // pred_check
    _
  $region19: #{primary_caps_forward.1} parent=0 // pred_check_branch
    %20 = sbr.rel (0) target = $region21
  $region20: #{primary_caps_forward.1} parent=0 // pred_region
    _
  $region21: #{primary_caps_forward.1} parent=0 // pred_fallthru
    _
  // Predicated region
  $region22: #{primary_caps_forward.1} parent=0 // pred_check
    _
  $region23: #{primary_caps_forward.1} parent=0 // pred_check_branch
    %22 = sbr.rel (0) target = $region25
  $region24: #{primary_caps_forward.1} parent=0 // pred_region
    _
  $region25: #{primary_caps_forward.1} parent=0 // pred_fallthru
    _
  %v24 = vld [vmem:[%s0] sm:$0xff]
  %v25 = vld [vmem:[%s0 + $0x8] sm:$0xff]
  %v26 = vld [vmem:[%s0 + $0x10] sm:$0xff]
  %v27 = vld [vmem:[%s0 + $0x18] sm:$0xff]
  %v28 = vld [vmem:[%s0 + $0x20] sm:$0xff]
  %v29 = vld [vmem:[%s0 + $0x28] sm:$0xf]
  %v30 = vld [vmem:[%s0 + $0x2c] sm:$0xff]
  %v31 = vld [vmem:[%s0 + $0x34] sm:$0xff]
  %v32 = vld [vmem:[%s0 + $0x3c] sm:$0xff]
  %v33 = vld [vmem:[%s0 + $0x44] sm:$0xff]
  %v34 = vld [vmem:[%s0 + $0x4c] sm:$0xff]
  %v35 = vld [vmem:[%s0 + $0x54] sm:$0xf]
  %v36 = vld [vmem:[%s0 + $0x58] sm:$0xff]
  %v37 = vld [vmem:[%s0 + $0x60] sm:$0xff]
  %v38 = vld [vmem:[%s0 + $0x68] sm:$0xff]
  %v39 = vld [vmem:[%s0 + $0x70] sm:$0xff]
  %v40 = vld [vmem:[%s0 + $0x78] sm:$0xff]
  %v41 = vld [vmem:[%s0 + $0x80] sm:$0xf]
  %v42 = vld [vmem:[%s0 + $0x84] sm:$0xff]
  %v43 = vld [vmem:[%s0 + $0x8c] sm:$0xff]
  %v44 = vld [vmem:[%s0 + $0x94] sm:$0xff]
  %v45 = vld [vmem:[%s0 + $0x9c] sm:$0xff]
  %v46 = vld [vmem:[%s0 + $0xa4] sm:$0xff]
  %v47 = vld [vmem:[%s0 + $0xac] sm:$0xf]
  %v48 = vld [vmem:[%s1] sm:$0xff]
  %v49 = vld [vmem:[%s1 + $0x8] sm:$0xff]
  %v50 = vld [vmem:[%s1 + $0x10] sm:$0xff]
  %v51 = vld [vmem:[%s1 + $0x18] sm:$0xff]
  %v52 = vld [vmem:[%s1 + $0x20] sm:$0xff]
  %v53 = vld [vmem:[%s1 + $0x28] sm:$0xff]
  %v54 = vld [vmem:[%s1 + $0x30] sm:$0xff]
  %v55 = vld [vmem:[%s1 + $0x38] sm:$0xff]
  %v56 = vld [vmem:[%s1 + $0x40] sm:$0xff]
  %v57 = vld [vmem:[%s1 + $0x48] sm:$0xff]
  %v58 = vld [vmem:[%s1 + $0x50] sm:$0xff]
  %v59 = vld [vmem:[%s1 + $0x58] sm:$0xff]
  %v60 = vld [vmem:[%s1 + $0x60] sm:$0xff]
  %v61 = vld [vmem:[%s1 + $0x68] sm:$0xff]
  %v62 = vld [vmem:[%s1 + $0x70] sm:$0xff]
  %v63 = vld [vmem:[%s1 + $0x78] sm:$0xff]
  %v64 = vld [vmem:[%s1 + $0x80] sm:$0xff]
  %v65 = vld [vmem:[%s1 + $0x88] sm:$0xff]
  %v66 = vld [vmem:[%s1 + $0x90] sm:$0xff]
  %v67 = vld [vmem:[%s1 + $0x98] sm:$0xff]
  %v68 = vld [vmem:[%s1 + $0xa0] sm:$0xff]
  %v69 = vld [vmem:[%s1 + $0xa8] sm:$0xff]
  %v70 = vld [vmem:[%s1 + $0xb0] sm:$0xff]
  %v71 = vld [vmem:[%s1 + $0xb8] sm:$0xff]
  %v72 = vld [vmem:[%s1 + $0xc0] sm:$0xff]
  %v73 = vld [vmem:[%s1 + $0xc8] sm:$0xff]
  %v74 = vld [vmem:[%s1 + $0xd0] sm:$0xff]
  %v75 = vld [vmem:[%s1 + $0xd8] sm:$0xff]
  %v76 = vld [vmem:[%s1 + $0xe0] sm:$0xff]
  %v77 = vld [vmem:[%s1 + $0xe8] sm:$0xff]
  %v78 = vld [vmem:[%s1 + $0xf0] sm:$0xff]
  %v79 = vld [vmem:[%s1 + $0xf8] sm:$0xff]
  %v80 = vld [vmem:[%s1 + $0x100] sm:$0xff]
  %v81 = vld [vmem:[%s1 + $0x108] sm:$0xff]
  %v82 = vld [vmem:[%s1 + $0x110] sm:$0xff]
  %v83 = vld [vmem:[%s1 + $0x118] sm:$0xff]
  %v84 = vld [vmem:[%s1 + $0x120] sm:$0xff]
  %v85 = vld [vmem:[%s1 + $0x128] sm:$0xff]
  %v86 = vld [vmem:[%s1 + $0x130] sm:$0xff]
  %v87 = vld [vmem:[%s1 + $0x138] sm:$0xff]
  %v88 = vld [vmem:[%s1 + $0x140] sm:$0xff]
  %v89 = vld [vmem:[%s1 + $0x148] sm:$0xff]
  %v90 = vld [vmem:[%s1 + $0x150] sm:$0xff]
  %v91 = vld [vmem:[%s1 + $0x158] sm:$0xff]
  %v92 = vld [vmem:[%s1 + $0x160] sm:$0xff]
  %v93 = vld [vmem:[%s1 + $0x168] sm:$0xff]
  %v94 = vld [vmem:[%s1 + $0x170] sm:$0xff]
  %v95 = vld [vmem:[%s1 + $0x178] sm:$0xff]
  %v96 = vld [vmem:[%s1 + $0x180] sm:$0xff]
  %v97 = vld [vmem:[%s1 + $0x188] sm:$0xff]
  %v98 = vld [vmem:[%s1 + $0x190] sm:$0xff]
  %v99 = vld [vmem:[%s1 + $0x198] sm:$0xff]
  %v100 = vld [vmem:[%s1 + $0x1a0] sm:$0xff]
  %v101 = vld [vmem:[%s1 + $0x1a8] sm:$0xff]
  %v102 = vld [vmem:[%s1 + $0x1b0] sm:$0xff]
  %v103 = vld [vmem:[%s1 + $0x1b8] sm:$0xff]
  %v104 = vld [vmem:[%s1 + $0x1c0] sm:$0xff]
  %v105 = vld [vmem:[%s1 + $0x1c8] sm:$0xff]
  %v106 = vld [vmem:[%s1 + $0x1d0] sm:$0xff]
  %v107 = vld [vmem:[%s1 + $0x1d8] sm:$0xff]
  %v108 = vld [vmem:[%s1 + $0x1e0] sm:$0xff]
  %v109 = vld [vmem:[%s1 + $0x1e8] sm:$0xff]
  %v110 = vld [vmem:[%s1 + $0x1f0] sm:$0xff]
  %v111 = vld [vmem:[%s1 + $0x1f8] sm:$0xff]
  %v112 = vld [vmem:[%s1 + $0x200] sm:$0xff]
  %v113 = vld [vmem:[%s1 + $0x208] sm:$0xff]
  %v114 = vld [vmem:[%s1 + $0x210] sm:$0xff]
  %v115 = vld [vmem:[%s1 + $0x218] sm:$0xff]
  %v116 = vld [vmem:[%s1 + $0x220] sm:$0xff]
  %v117 = vld [vmem:[%s1 + $0x228] sm:$0xff]
  %v118 = vld [vmem:[%s1 + $0x230] sm:$0xff]
  %v119 = vld [vmem:[%s1 + $0x238] sm:$0xff]
  %v120 = vld [vmem:[%s1 + $0x240] sm:$0xff]
  %v121 = vld [vmem:[%s1 + $0x248] sm:$0xff]
  %v122 = vld [vmem:[%s1 + $0x250] sm:$0xff]
  %v123 = vld [vmem:[%s1 + $0x258] sm:$0xff]
  %v124 = vld [vmem:[%s1 + $0x260] sm:$0xff]
  %v125 = vld [vmem:[%s1 + $0x268] sm:$0xff]
  %v126 = vld [vmem:[%s1 + $0x270] sm:$0xff]
  %v127 = vld [vmem:[%s1 + $0x278] sm:$0xff]
  %v128 = vld [vmem:[%s1 + $0x280] sm:$0xff]
  %v129 = vld [vmem:[%s1 + $0x288] sm:$0xff]
  %v130 = vld [vmem:[%s1 + $0x290] sm:$0xff]
  %v131 = vld [vmem:[%s1 + $0x298] sm:$0xff]
  %v132 = vld [vmem:[%s1 + $0x2a0] sm:$0xff]
  %v133 = vld [vmem:[%s1 + $0x2a8] sm:$0xff]
  %v134 = vld [vmem:[%s1 + $0x2b0] sm:$0xff]
  %v135 = vld [vmem:[%s1 + $0x2b8] sm:$0xff]
  %v136 = vld [vmem:[%s1 + $0x2c0] sm:$0xff]
  %v137 = vld [vmem:[%s1 + $0x2c8] sm:$0xff]
  %v138 = vld [vmem:[%s1 + $0x2d0] sm:$0xff]
  %v139 = vld [vmem:[%s1 + $0x2d8] sm:$0xff]
  %v140 = vld [vmem:[%s1 + $0x2e0] sm:$0xff]
  %v141 = vld [vmem:[%s1 + $0x2e8] sm:$0xff]
  %v142 = vld [vmem:[%s1 + $0x2f0] sm:$0xff]
  %v143 = vld [vmem:[%s1 + $0x2f8] sm:$0xff]
  %v144 = vld [vmem:[%s1 + $0x300] sm:$0xff]
  %v145 = vld [vmem:[%s1 + $0x308] sm:$0xff]
  %v146 = vld [vmem:[%s1 + $0x310] sm:$0xff]
  %v147 = vld [vmem:[%s1 + $0x318] sm:$0xff]
  %v148 = vld [vmem:[%s1 + $0x320] sm:$0xff]
  %v149 = vld [vmem:[%s1 + $0x328] sm:$0xff]
  %v150 = vld [vmem:[%s1 + $0x330] sm:$0xff]
  %v151 = vld [vmem:[%s1 + $0x338] sm:$0xff]
  %v152 = vld [vmem:[%s1 + $0x340] sm:$0xff]
  %v153 = vld [vmem:[%s1 + $0x348] sm:$0xff]
  %v154 = vld [vmem:[%s1 + $0x350] sm:$0xff]
  %v155 = vld [vmem:[%s1 + $0x358] sm:$0xff]
  %v156 = vld [vmem:[%s1 + $0x360] sm:$0xff]
  %v157 = vld [vmem:[%s1 + $0x368] sm:$0xff]
  %v158 = vld [vmem:[%s1 + $0x370] sm:$0xff]
  %v159 = vld [vmem:[%s1 + $0x378] sm:$0xff]
  %v160 = vld [vmem:[%s1 + $0x380] sm:$0xff]
  %v161 = vld [vmem:[%s1 + $0x388] sm:$0xff]
  %v162 = vld [vmem:[%s1 + $0x390] sm:$0xff]
  %v163 = vld [vmem:[%s1 + $0x398] sm:$0xff]
  %v164 = vld [vmem:[%s1 + $0x3a0] sm:$0xff]
  %v165 = vld [vmem:[%s1 + $0x3a8] sm:$0xff]
  %v166 = vld [vmem:[%s1 + $0x3b0] sm:$0xff]
  %v167 = vld [vmem:[%s1 + $0x3b8] sm:$0xff]
  %v168 = vld [vmem:[%s1 + $0x3c0] sm:$0xff]
  %v169 = vld [vmem:[%s1 + $0x3c8] sm:$0xff]
  %v170 = vld [vmem:[%s1 + $0x3d0] sm:$0xff]
  %v171 = vld [vmem:[%s1 + $0x3d8] sm:$0xff]
  %v172 = vld [vmem:[%s1 + $0x3e0] sm:$0xff]
  %v173 = vld [vmem:[%s1 + $0x3e8] sm:$0xff]
  %v174 = vld [vmem:[%s1 + $0x3f0] sm:$0xff]
  %v175 = vld [vmem:[%s1 + $0x3f8] sm:$0xff]
  %v176 = vld [vmem:[%s1 + $0x400] sm:$0xff]
  %v177 = vld [vmem:[%s1 + $0x408] sm:$0xff]
  %v178 = vld [vmem:[%s1 + $0x410] sm:$0xff]
  %v179 = vld [vmem:[%s1 + $0x418] sm:$0xff]
  %v180 = vld [vmem:[%s1 + $0x420] sm:$0xff]
  %v181 = vld [vmem:[%s1 + $0x428] sm:$0xff]
  %v182 = vld [vmem:[%s1 + $0x430] sm:$0xff]
  %v183 = vld [vmem:[%s1 + $0x438] sm:$0xff]
  %v184 = vld [vmem:[%s1 + $0x440] sm:$0xff]
  %v185 = vld [vmem:[%s1 + $0x448] sm:$0xff]
  %v186 = vld [vmem:[%s1 + $0x450] sm:$0xff]
  %v187 = vld [vmem:[%s1 + $0x458] sm:$0xff]
  %v188 = vld [vmem:[%s1 + $0x460] sm:$0xff]
  %v189 = vld [vmem:[%s1 + $0x468] sm:$0xff]
  %v190 = vld [vmem:[%s1 + $0x470] sm:$0xff]
  %v191 = vld [vmem:[%s1 + $0x478] sm:$0xff]
  %v192 = vld [vmem:[%s1 + $0x480] sm:$0xff]
  %v193 = vld [vmem:[%s1 + $0x488] sm:$0xff]
  %v194 = vld [vmem:[%s1 + $0x490] sm:$0xff]
  %v195 = vld [vmem:[%s1 + $0x498] sm:$0xff]
  %v196 = vld [vmem:[%s1 + $0x4a0] sm:$0xff]
  %v197 = vld [vmem:[%s1 + $0x4a8] sm:$0xff]
  %v198 = vld [vmem:[%s1 + $0x4b0] sm:$0xff]
  %v199 = vld [vmem:[%s1 + $0x4b8] sm:$0xff]
  %v200 = vld [vmem:[%s1 + $0x4c0] sm:$0xff]
  %v201 = vld [vmem:[%s1 + $0x4c8] sm:$0xff]
  %v202 = vld [vmem:[%s1 + $0x4d0] sm:$0xff]
  %v203 = vld [vmem:[%s1 + $0x4d8] sm:$0xff]
  %v204 = vld [vmem:[%s1 + $0x4e0] sm:$0xff]
  %v205 = vld [vmem:[%s1 + $0x4e8] sm:$0xff]
  %v206 = vld [vmem:[%s1 + $0x4f0] sm:$0xff]
  %v207 = vld [vmem:[%s1 + $0x4f8] sm:$0xff]
  %v208 = vld [vmem:[%s1 + $0x500] sm:$0xff]
  %v209 = vld [vmem:[%s1 + $0x508] sm:$0xff]
  %v210 = vld [vmem:[%s1 + $0x510] sm:$0xff]
  %v211 = vld [vmem:[%s1 + $0x518] sm:$0xff]
  %v212 = vld [vmem:[%s1 + $0x520] sm:$0xff]
  %v213 = vld [vmem:[%s1 + $0x528] sm:$0xff]
  %v214 = vld [vmem:[%s1 + $0x530] sm:$0xff]
  %v215 = vld [vmem:[%s1 + $0x538] sm:$0xff]
  %v216 = vld [vmem:[%s1 + $0x540] sm:$0xff]
  %v217 = vld [vmem:[%s1 + $0x548] sm:$0xff]
  %v218 = vld [vmem:[%s1 + $0x550] sm:$0xff]
  %v219 = vld [vmem:[%s1 + $0x558] sm:$0xff]
  %v220 = vld [vmem:[%s1 + $0x560] sm:$0xff]
  %v221 = vld [vmem:[%s1 + $0x568] sm:$0xff]
  %v222 = vld [vmem:[%s1 + $0x570] sm:$0xff]
  %v223 = vld [vmem:[%s1 + $0x578] sm:$0xff]
  %v224 = vld [vmem:[%s2] sm:$0x3]
  %v226 = vlaneseq
  %v227 = vshrl.u32 %v226, 7
  %v228 = vsub.s32 0, %v227
  %v229 = vrot.slane %v224, %v228
  %v230 = vlaneseq
  %v231 = vshrl.u32 %v230, 7
  %v232 = vsub.s32 1, %v231
  %v233 = vrot.slane %v224, %v232
  %v260 = vunpack.c.l.b16 %v24
  %v261 = vunpack.c.h.b16 %v24
  %v262 = vunpack.c.l.b16 %v25
  %v263 = vunpack.c.h.b16 %v25
  %v264 = vunpack.c.l.b16 %v26
  %v265 = vunpack.c.h.b16 %v26
  %v266 = vunpack.c.l.b16 %v27
  %v267 = vunpack.c.h.b16 %v27
  %v268 = vunpack.c.l.b16 %v28
  %v269 = vunpack.c.h.b16 %v28
  %v270 = vunpack.c.l.b16 %v29
  %v271 = vunpack.c.l.b16 %v30
  %v272 = vunpack.c.h.b16 %v30
  %v273 = vunpack.c.l.b16 %v31
  %v274 = vunpack.c.h.b16 %v31
  %v275 = vunpack.c.l.b16 %v32
  %v276 = vunpack.c.h.b16 %v32
  %v277 = vunpack.c.l.b16 %v33
  %v278 = vunpack.c.h.b16 %v33
  %v279 = vunpack.c.l.b16 %v34
  %v280 = vunpack.c.h.b16 %v34
  %v281 = vunpack.c.l.b16 %v35
  %v282 = vunpack.c.l.b16 %v36
  %v283 = vunpack.c.h.b16 %v36
  %v284 = vunpack.c.l.b16 %v37
  %v285 = vunpack.c.h.b16 %v37
  %v286 = vunpack.c.l.b16 %v38
  %v287 = vunpack.c.h.b16 %v38
  %v288 = vunpack.c.l.b16 %v39
  %v289 = vunpack.c.h.b16 %v39
  %v290 = vunpack.c.l.b16 %v40
  %v291 = vunpack.c.h.b16 %v40
  %v292 = vunpack.c.l.b16 %v41
  %v293 = vunpack.c.l.b16 %v42
  %v294 = vunpack.c.h.b16 %v42
  %v295 = vunpack.c.l.b16 %v43
  %v296 = vunpack.c.h.b16 %v43
  %v297 = vunpack.c.l.b16 %v44
  %v298 = vunpack.c.h.b16 %v44
  %v299 = vunpack.c.l.b16 %v45
  %v300 = vunpack.c.h.b16 %v45
  %v301 = vunpack.c.l.b16 %v46
  %v302 = vunpack.c.h.b16 %v46
  %v303 = vunpack.c.l.b16 %v47
  %v304 = vpack.c.b16 %v271, %v260
  %v305 = vpack.c.b16 %v272, %v261
  %v306 = vpack.c.b16 %v273, %v262
  %v307 = vpack.c.b16 %v274, %v263
  %v308 = vpack.c.b16 %v275, %v264
  %v309 = vpack.c.b16 %v276, %v265
  %v310 = vpack.c.b16 %v277, %v266
  %v311 = vpack.c.b16 %v278, %v267
  %v312 = vpack.c.b16 %v279, %v268
  %v313 = vpack.c.b16 %v280, %v269
  %v314 = vpack.c.b16 %v281, %v270
  %v315 = vpack.c.b16 %v293, %v282
  %v316 = vpack.c.b16 %v294, %v283
  %v317 = vpack.c.b16 %v295, %v284
  %v318 = vpack.c.b16 %v296, %v285
  %v319 = vpack.c.b16 %v297, %v286
  %v320 = vpack.c.b16 %v298, %v287
  %v321 = vpack.c.b16 %v299, %v288
  %v322 = vpack.c.b16 %v300, %v289
  %v323 = vpack.c.b16 %v301, %v290
  %v324 = vpack.c.b16 %v302, %v291
  %v325 = vpack.c.b16 %v303, %v292
  %v524 = vunpack.c.l.b16 %v48
  %v525 = vunpack.c.h.b16 %v48
  %v526 = vunpack.c.l.b16 %v49
  %v527 = vunpack.c.h.b16 %v49
  %v528 = vunpack.c.l.b16 %v50
  %v529 = vunpack.c.h.b16 %v50
  %v530 = vunpack.c.l.b16 %v51
  %v531 = vunpack.c.h.b16 %v51
  %v532 = vunpack.c.l.b16 %v52
  %v533 = vunpack.c.h.b16 %v52
  %v534 = vunpack.c.l.b16 %v53
  %v535 = vunpack.c.h.b16 %v53
  %v536 = vunpack.c.l.b16 %v54
  %v537 = vunpack.c.h.b16 %v54
  %v538 = vunpack.c.l.b16 %v55
  %v539 = vunpack.c.h.b16 %v55
  %v540 = vunpack.c.l.b16 %v56
  %v541 = vunpack.c.h.b16 %v56
  %v542 = vunpack.c.l.b16 %v57
  %v543 = vunpack.c.h.b16 %v57
  %v544 = vunpack.c.l.b16 %v58
  %v545 = vunpack.c.h.b16 %v58
  %v546 = vunpack.c.l.b16 %v59
  %v547 = vunpack.c.h.b16 %v59
  %v548 = vunpack.c.l.b16 %v60
  %v549 = vunpack.c.h.b16 %v60
  %v550 = vunpack.c.l.b16 %v61
  %v551 = vunpack.c.h.b16 %v61
  %v552 = vunpack.c.l.b16 %v62
  %v553 = vunpack.c.h.b16 %v62
  %v554 = vunpack.c.l.b16 %v63
  %v555 = vunpack.c.h.b16 %v63
  %v556 = vunpack.c.l.b16 %v64
  %v557 = vunpack.c.h.b16 %v64
  %v558 = vunpack.c.l.b16 %v65
  %v559 = vunpack.c.h.b16 %v65
  %v560 = vunpack.c.l.b16 %v66
  %v561 = vunpack.c.h.b16 %v66
  %v562 = vunpack.c.l.b16 %v67
  %v563 = vunpack.c.h.b16 %v67
  %v564 = vunpack.c.l.b16 %v68
  %v565 = vunpack.c.h.b16 %v68
  %v566 = vunpack.c.l.b16 %v69
  %v567 = vunpack.c.h.b16 %v69
  %v568 = vunpack.c.l.b16 %v70
  %v569 = vunpack.c.h.b16 %v70
  %v570 = vunpack.c.l.b16 %v71
  %v571 = vunpack.c.h.b16 %v71
  %v572 = vunpack.c.l.b16 %v72
  %v573 = vunpack.c.h.b16 %v72
  %v574 = vunpack.c.l.b16 %v73
  %v575 = vunpack.c.h.b16 %v73
  %v576 = vunpack.c.l.b16 %v74
  %v577 = vunpack.c.h.b16 %v74
  %v578 = vunpack.c.l.b16 %v75
  %v579 = vunpack.c.h.b16 %v75
  %v580 = vunpack.c.l.b16 %v76
  %v581 = vunpack.c.h.b16 %v76
  %v582 = vunpack.c.l.b16 %v77
  %v583 = vunpack.c.h.b16 %v77
  %v584 = vunpack.c.l.b16 %v78
  %v585 = vunpack.c.h.b16 %v78
  %v586 = vunpack.c.l.b16 %v79
  %v587 = vunpack.c.h.b16 %v79
  %v588 = vunpack.c.l.b16 %v80
  %v589 = vunpack.c.h.b16 %v80
  %v590 = vunpack.c.l.b16 %v81
  %v591 = vunpack.c.h.b16 %v81
  %v592 = vunpack.c.l.b16 %v82
  %v593 = vunpack.c.h.b16 %v82
  %v594 = vunpack.c.l.b16 %v83
  %v595 = vunpack.c.h.b16 %v83
  %v596 = vunpack.c.l.b16 %v84
  %v597 = vunpack.c.h.b16 %v84
  %v598 = vunpack.c.l.b16 %v85
  %v599 = vunpack.c.h.b16 %v85
  %v600 = vunpack.c.l.b16 %v86
  %v601 = vunpack.c.h.b16 %v86
  %v602 = vunpack.c.l.b16 %v87
  %v603 = vunpack.c.h.b16 %v87
  %v604 = vunpack.c.l.b16 %v88
  %v605 = vunpack.c.h.b16 %v88
  %v606 = vunpack.c.l.b16 %v89
  %v607 = vunpack.c.h.b16 %v89
  %v608 = vunpack.c.l.b16 %v90
  %v609 = vunpack.c.h.b16 %v90
  %v610 = vunpack.c.l.b16 %v91
  %v611 = vunpack.c.h.b16 %v91
  %v612 = vunpack.c.l.b16 %v92
  %v613 = vunpack.c.h.b16 %v92
  %v614 = vunpack.c.l.b16 %v93
  %v615 = vunpack.c.h.b16 %v93
  %v616 = vunpack.c.l.b16 %v94
  %v617 = vunpack.c.h.b16 %v94
  %v618 = vunpack.c.l.b16 %v95
  %v619 = vunpack.c.h.b16 %v95
  %v620 = vunpack.c.l.b16 %v96
  %v621 = vunpack.c.h.b16 %v96
  %v622 = vunpack.c.l.b16 %v97
  %v623 = vunpack.c.h.b16 %v97
  %v624 = vunpack.c.l.b16 %v98
  %v625 = vunpack.c.h.b16 %v98
  %v626 = vunpack.c.l.b16 %v99
  %v627 = vunpack.c.h.b16 %v99
  %v628 = vunpack.c.l.b16 %v100
  %v629 = vunpack.c.h.b16 %v100
  %v630 = vunpack.c.l.b16 %v101
  %v631 = vunpack.c.h.b16 %v101
  %v632 = vunpack.c.l.b16 %v102
  %v633 = vunpack.c.h.b16 %v102
  %v634 = vunpack.c.l.b16 %v103
  %v635 = vunpack.c.h.b16 %v103
  %v636 = vunpack.c.l.b16 %v104
  %v637 = vunpack.c.h.b16 %v104
  %v638 = vunpack.c.l.b16 %v105
  %v639 = vunpack.c.h.b16 %v105
  %v640 = vunpack.c.l.b16 %v106
  %v641 = vunpack.c.h.b16 %v106
  %v642 = vunpack.c.l.b16 %v107
  %v643 = vunpack.c.h.b16 %v107
  %v644 = vunpack.c.l.b16 %v108
  %v645 = vunpack.c.h.b16 %v108
  %v646 = vunpack.c.l.b16 %v109
  %v647 = vunpack.c.h.b16 %v109
  %v648 = vunpack.c.l.b16 %v110
  %v649 = vunpack.c.h.b16 %v110
  %v650 = vunpack.c.l.b16 %v111
  %v651 = vunpack.c.h.b16 %v111
  %v652 = vunpack.c.l.b16 %v112
  %v653 = vunpack.c.h.b16 %v112
  %v654 = vunpack.c.l.b16 %v113
  %v655 = vunpack.c.h.b16 %v113
  %v656 = vunpack.c.l.b16 %v114
  %v657 = vunpack.c.h.b16 %v114
  %v658 = vunpack.c.l.b16 %v115
  %v659 = vunpack.c.h.b16 %v115
  %v660 = vunpack.c.l.b16 %v116
  %v661 = vunpack.c.h.b16 %v116
  %v662 = vunpack.c.l.b16 %v117
  %v663 = vunpack.c.h.b16 %v117
  %v664 = vunpack.c.l.b16 %v118
  %v665 = vunpack.c.h.b16 %v118
  %v666 = vunpack.c.l.b16 %v119
  %v667 = vunpack.c.h.b16 %v119
  %v668 = vunpack.c.l.b16 %v120
  %v669 = vunpack.c.h.b16 %v120
  %v670 = vunpack.c.l.b16 %v121
  %v671 = vunpack.c.h.b16 %v121
  %v672 = vunpack.c.l.b16 %v122
  %v673 = vunpack.c.h.b16 %v122
  %v674 = vunpack.c.l.b16 %v123
  %v675 = vunpack.c.h.b16 %v123
  %v676 = vunpack.c.l.b16 %v124
  %v677 = vunpack.c.h.b16 %v124
  %v678 = vunpack.c.l.b16 %v125
  %v679 = vunpack.c.h.b16 %v125
  %v680 = vunpack.c.l.b16 %v126
  %v681 = vunpack.c.h.b16 %v126
  %v682 = vunpack.c.l.b16 %v127
  %v683 = vunpack.c.h.b16 %v127
  %v684 = vunpack.c.l.b16 %v128
  %v685 = vunpack.c.h.b16 %v128
  %v686 = vunpack.c.l.b16 %v129
  %v687 = vunpack.c.h.b16 %v129
  %v688 = vunpack.c.l.b16 %v130
  %v689 = vunpack.c.h.b16 %v130
  %v690 = vunpack.c.l.b16 %v131
  %v691 = vunpack.c.h.b16 %v131
  %v692 = vunpack.c.l.b16 %v132
  %v693 = vunpack.c.h.b16 %v132
  %v694 = vunpack.c.l.b16 %v133
  %v695 = vunpack.c.h.b16 %v133
  %v696 = vunpack.c.l.b16 %v134
  %v697 = vunpack.c.h.b16 %v134
  %v698 = vunpack.c.l.b16 %v135
  %v699 = vunpack.c.h.b16 %v135
  %v700 = vunpack.c.l.b16 %v136
  %v701 = vunpack.c.h.b16 %v136
  %v702 = vunpack.c.l.b16 %v137
  %v703 = vunpack.c.h.b16 %v137
  %v704 = vunpack.c.l.b16 %v138
  %v705 = vunpack.c.h.b16 %v138
  %v706 = vunpack.c.l.b16 %v139
  %v707 = vunpack.c.h.b16 %v139
  %v708 = vunpack.c.l.b16 %v140
  %v709 = vunpack.c.h.b16 %v140
  %v710 = vunpack.c.l.b16 %v141
  %v711 = vunpack.c.h.b16 %v141
  %v712 = vunpack.c.l.b16 %v142
  %v713 = vunpack.c.h.b16 %v142
  %v714 = vunpack.c.l.b16 %v143
  %v715 = vunpack.c.h.b16 %v143
  %v716 = vunpack.c.l.b16 %v144
  %v717 = vunpack.c.h.b16 %v144
  %v718 = vunpack.c.l.b16 %v145
  %v719 = vunpack.c.h.b16 %v145
  %v720 = vunpack.c.l.b16 %v146
  %v721 = vunpack.c.h.b16 %v146
  %v722 = vunpack.c.l.b16 %v147
  %v723 = vunpack.c.h.b16 %v147
  %v724 = vunpack.c.l.b16 %v148
  %v725 = vunpack.c.h.b16 %v148
  %v726 = vunpack.c.l.b16 %v149
  %v727 = vunpack.c.h.b16 %v149
  %v728 = vunpack.c.l.b16 %v150
  %v729 = vunpack.c.h.b16 %v150
  %v730 = vunpack.c.l.b16 %v151
  %v731 = vunpack.c.h.b16 %v151
  %v732 = vunpack.c.l.b16 %v152
  %v733 = vunpack.c.h.b16 %v152
  %v734 = vunpack.c.l.b16 %v153
  %v735 = vunpack.c.h.b16 %v153
  %v736 = vunpack.c.l.b16 %v154
  %v737 = vunpack.c.h.b16 %v154
  %v738 = vunpack.c.l.b16 %v155
  %v739 = vunpack.c.h.b16 %v155
  %v740 = vunpack.c.l.b16 %v156
  %v741 = vunpack.c.h.b16 %v156
  %v742 = vunpack.c.l.b16 %v157
  %v743 = vunpack.c.h.b16 %v157
  %v744 = vunpack.c.l.b16 %v158
  %v745 = vunpack.c.h.b16 %v158
  %v746 = vunpack.c.l.b16 %v159
  %v747 = vunpack.c.h.b16 %v159
  %v748 = vunpack.c.l.b16 %v160
  %v749 = vunpack.c.h.b16 %v160
  %v750 = vunpack.c.l.b16 %v161
  %v751 = vunpack.c.h.b16 %v161
  %v752 = vunpack.c.l.b16 %v162
  %v753 = vunpack.c.h.b16 %v162
  %v754 = vunpack.c.l.b16 %v163
  %v755 = vunpack.c.h.b16 %v163
  %v756 = vunpack.c.l.b16 %v164
  %v757 = vunpack.c.h.b16 %v164
  %v758 = vunpack.c.l.b16 %v165
  %v759 = vunpack.c.h.b16 %v165
  %v760 = vunpack.c.l.b16 %v166
  %v761 = vunpack.c.h.b16 %v166
  %v762 = vunpack.c.l.b16 %v167
  %v763 = vunpack.c.h.b16 %v167
  %v764 = vunpack.c.l.b16 %v168
  %v765 = vunpack.c.h.b16 %v168
  %v766 = vunpack.c.l.b16 %v169
  %v767 = vunpack.c.h.b16 %v169
  %v768 = vunpack.c.l.b16 %v170
  %v769 = vunpack.c.h.b16 %v170
  %v770 = vunpack.c.l.b16 %v171
  %v771 = vunpack.c.h.b16 %v171
  %v772 = vunpack.c.l.b16 %v172
  %v773 = vunpack.c.h.b16 %v172
  %v774 = vunpack.c.l.b16 %v173
  %v775 = vunpack.c.h.b16 %v173
  %v776 = vunpack.c.l.b16 %v174
  %v777 = vunpack.c.h.b16 %v174
  %v778 = vunpack.c.l.b16 %v175
  %v779 = vunpack.c.h.b16 %v175
  %v780 = vunpack.c.l.b16 %v176
  %v781 = vunpack.c.h.b16 %v176
  %v782 = vunpack.c.l.b16 %v177
  %v783 = vunpack.c.h.b16 %v177
  %v784 = vunpack.c.l.b16 %v178
  %v785 = vunpack.c.h.b16 %v178
  %v786 = vunpack.c.l.b16 %v179
  %v787 = vunpack.c.h.b16 %v179
  %v788 = vunpack.c.l.b16 %v180
  %v789 = vunpack.c.h.b16 %v180
  %v790 = vunpack.c.l.b16 %v181
  %v791 = vunpack.c.h.b16 %v181
  %v792 = vunpack.c.l.b16 %v182
  %v793 = vunpack.c.h.b16 %v182
  %v794 = vunpack.c.l.b16 %v183
  %v795 = vunpack.c.h.b16 %v183
  %v796 = vunpack.c.l.b16 %v184
  %v797 = vunpack.c.h.b16 %v184
  %v798 = vunpack.c.l.b16 %v185
  %v799 = vunpack.c.h.b16 %v185
  %v800 = vunpack.c.l.b16 %v186
  %v801 = vunpack.c.h.b16 %v186
  %v802 = vunpack.c.l.b16 %v187
  %v803 = vunpack.c.h.b16 %v187
  %v804 = vunpack.c.l.b16 %v188
  %v805 = vunpack.c.h.b16 %v188
  %v806 = vunpack.c.l.b16 %v189
  %v807 = vunpack.c.h.b16 %v189
  %v808 = vunpack.c.l.b16 %v190
  %v809 = vunpack.c.h.b16 %v190
  %v810 = vunpack.c.l.b16 %v191
  %v811 = vunpack.c.h.b16 %v191
  %v812 = vunpack.c.l.b16 %v192
  %v813 = vunpack.c.h.b16 %v192
  %v814 = vunpack.c.l.b16 %v193
  %v815 = vunpack.c.h.b16 %v193
  %v816 = vunpack.c.l.b16 %v194
  %v817 = vunpack.c.h.b16 %v194
  %v818 = vunpack.c.l.b16 %v195
  %v819 = vunpack.c.h.b16 %v195
  %v820 = vunpack.c.l.b16 %v196
  %v821 = vunpack.c.h.b16 %v196
  %v822 = vunpack.c.l.b16 %v197
  %v823 = vunpack.c.h.b16 %v197
  %v824 = vunpack.c.l.b16 %v198
  %v825 = vunpack.c.h.b16 %v198
  %v826 = vunpack.c.l.b16 %v199
  %v827 = vunpack.c.h.b16 %v199
  %v828 = vunpack.c.l.b16 %v200
  %v829 = vunpack.c.h.b16 %v200
  %v830 = vunpack.c.l.b16 %v201
  %v831 = vunpack.c.h.b16 %v201
  %v832 = vunpack.c.l.b16 %v202
  %v833 = vunpack.c.h.b16 %v202
  %v834 = vunpack.c.l.b16 %v203
  %v835 = vunpack.c.h.b16 %v203
  %v836 = vunpack.c.l.b16 %v204
  %v837 = vunpack.c.h.b16 %v204
  %v838 = vunpack.c.l.b16 %v205
  %v839 = vunpack.c.h.b16 %v205
  %v840 = vunpack.c.l.b16 %v206
  %v841 = vunpack.c.h.b16 %v206
  %v842 = vunpack.c.l.b16 %v207
  %v843 = vunpack.c.h.b16 %v207
  %v844 = vunpack.c.l.b16 %v208
  %v845 = vunpack.c.h.b16 %v208
  %v846 = vunpack.c.l.b16 %v209
  %v847 = vunpack.c.h.b16 %v209
  %v848 = vunpack.c.l.b16 %v210
  %v849 = vunpack.c.h.b16 %v210
  %v850 = vunpack.c.l.b16 %v211
  %v851 = vunpack.c.h.b16 %v211
  %v852 = vunpack.c.l.b16 %v212
  %v853 = vunpack.c.h.b16 %v212
  %v854 = vunpack.c.l.b16 %v213
  %v855 = vunpack.c.h.b16 %v213
  %v856 = vunpack.c.l.b16 %v214
  %v857 = vunpack.c.h.b16 %v214
  %v858 = vunpack.c.l.b16 %v215
  %v859 = vunpack.c.h.b16 %v215
  %v860 = vunpack.c.l.b16 %v216
  %v861 = vunpack.c.h.b16 %v216
  %v862 = vunpack.c.l.b16 %v217
  %v863 = vunpack.c.h.b16 %v217
  %v864 = vunpack.c.l.b16 %v218
  %v865 = vunpack.c.h.b16 %v218
  %v866 = vunpack.c.l.b16 %v219
  %v867 = vunpack.c.h.b16 %v219
  %v868 = vunpack.c.l.b16 %v220
  %v869 = vunpack.c.h.b16 %v220
  %v870 = vunpack.c.l.b16 %v221
  %v871 = vunpack.c.h.b16 %v221
  %v872 = vunpack.c.l.b16 %v222
  %v873 = vunpack.c.h.b16 %v222
  %v874 = vunpack.c.l.b16 %v223
  %v875 = vunpack.c.h.b16 %v223
  %v876 = vpack.c.b16 %v526, %v524
  %v877 = vpack.c.b16 %v527, %v525
  %v878 = vpack.c.b16 %v530, %v528
  %v879 = vpack.c.b16 %v531, %v529
  %v880 = vpack.c.b16 %v534, %v532
  %v881 = vpack.c.b16 %v535, %v533
  %v882 = vpack.c.b16 %v538, %v536
  %v883 = vpack.c.b16 %v539, %v537
  %v884 = vpack.c.b16 %v542, %v540
  %v885 = vpack.c.b16 %v543, %v541
  %v886 = vpack.c.b16 %v546, %v544
  %v887 = vpack.c.b16 %v547, %v545
  %v888 = vpack.c.b16 %v550, %v548
  %v889 = vpack.c.b16 %v551, %v549
  %v890 = vpack.c.b16 %v554, %v552
  %v891 = vpack.c.b16 %v555, %v553
  %v892 = vpack.c.b16 %v558, %v556
  %v893 = vpack.c.b16 %v559, %v557
  %v894 = vpack.c.b16 %v562, %v560
  %v895 = vpack.c.b16 %v563, %v561
  %v896 = vpack.c.b16 %v566, %v564
  %v897 = vpack.c.b16 %v567, %v565
  %v898 = vpack.c.b16 %v570, %v568
  %v899 = vpack.c.b16 %v571, %v569
  %v900 = vpack.c.b16 %v574, %v572
  %v901 = vpack.c.b16 %v575, %v573
  %v902 = vpack.c.b16 %v578, %v576
  %v903 = vpack.c.b16 %v579, %v577
  %v904 = vpack.c.b16 %v582, %v580
  %v905 = vpack.c.b16 %v583, %v581
  %v906 = vpack.c.b16 %v586, %v584
  %v907 = vpack.c.b16 %v587, %v585
  %v908 = vpack.c.b16 %v590, %v588
  %v909 = vpack.c.b16 %v591, %v589
  %v910 = vpack.c.b16 %v594, %v592
  %v911 = vpack.c.b16 %v595, %v593
  %v912 = vpack.c.b16 %v598, %v596
  %v913 = vpack.c.b16 %v599, %v597
  %v914 = vpack.c.b16 %v602, %v600
  %v915 = vpack.c.b16 %v603, %v601
  %v916 = vpack.c.b16 %v606, %v604
  %v917 = vpack.c.b16 %v607, %v605
  %v918 = vpack.c.b16 %v610, %v608
  %v919 = vpack.c.b16 %v611, %v609
  %v920 = vpack.c.b16 %v614, %v612
  %v921 = vpack.c.b16 %v615, %v613
  %v922 = vpack.c.b16 %v618, %v616
  %v923 = vpack.c.b16 %v619, %v617
  %v924 = vpack.c.b16 %v622, %v620
  %v925 = vpack.c.b16 %v623, %v621
  %v926 = vpack.c.b16 %v626, %v624
  %v927 = vpack.c.b16 %v627, %v625
  %v928 = vpack.c.b16 %v630, %v628
  %v929 = vpack.c.b16 %v631, %v629
  %v930 = vpack.c.b16 %v634, %v632
  %v931 = vpack.c.b16 %v635, %v633
  %v932 = vpack.c.b16 %v638, %v636
  %v933 = vpack.c.b16 %v639, %v637
  %v934 = vpack.c.b16 %v642, %v640
  %v935 = vpack.c.b16 %v643, %v641
  %v936 = vpack.c.b16 %v646, %v644
  %v937 = vpack.c.b16 %v647, %v645
  %v938 = vpack.c.b16 %v650, %v648
  %v939 = vpack.c.b16 %v651, %v649
  %v940 = vpack.c.b16 %v654, %v652
  %v941 = vpack.c.b16 %v655, %v653
  %v942 = vpack.c.b16 %v658, %v656
  %v943 = vpack.c.b16 %v659, %v657
  %v944 = vpack.c.b16 %v662, %v660
  %v945 = vpack.c.b16 %v663, %v661
  %v946 = vpack.c.b16 %v666, %v664
  %v947 = vpack.c.b16 %v667, %v665
  %v948 = vpack.c.b16 %v670, %v668
  %v949 = vpack.c.b16 %v671, %v669
  %v950 = vpack.c.b16 %v674, %v672
  %v951 = vpack.c.b16 %v675, %v673
  %v952 = vpack.c.b16 %v678, %v676
  %v953 = vpack.c.b16 %v679, %v677
  %v954 = vpack.c.b16 %v682, %v680
  %v955 = vpack.c.b16 %v683, %v681
  %v956 = vpack.c.b16 %v686, %v684
  %v957 = vpack.c.b16 %v687, %v685
  %v958 = vpack.c.b16 %v690, %v688
  %v959 = vpack.c.b16 %v691, %v689
  %v960 = vpack.c.b16 %v694, %v692
  %v961 = vpack.c.b16 %v695, %v693
  %v962 = vpack.c.b16 %v698, %v696
  %v963 = vpack.c.b16 %v699, %v697
  %v964 = vpack.c.b16 %v702, %v700
  %v965 = vpack.c.b16 %v703, %v701
  %v966 = vpack.c.b16 %v706, %v704
  %v967 = vpack.c.b16 %v707, %v705
  %v968 = vpack.c.b16 %v710, %v708
  %v969 = vpack.c.b16 %v711, %v709
  %v970 = vpack.c.b16 %v714, %v712
  %v971 = vpack.c.b16 %v715, %v713
  %v972 = vpack.c.b16 %v718, %v716
  %v973 = vpack.c.b16 %v719, %v717
  %v974 = vpack.c.b16 %v722, %v720
  %v975 = vpack.c.b16 %v723, %v721
  %v976 = vpack.c.b16 %v726, %v724
  %v977 = vpack.c.b16 %v727, %v725
  %v978 = vpack.c.b16 %v730, %v728
  %v979 = vpack.c.b16 %v731, %v729
  %v980 = vpack.c.b16 %v734, %v732
  %v981 = vpack.c.b16 %v735, %v733
  %v982 = vpack.c.b16 %v738, %v736
  %v983 = vpack.c.b16 %v739, %v737
  %v984 = vpack.c.b16 %v742, %v740
  %v985 = vpack.c.b16 %v743, %v741
  %v986 = vpack.c.b16 %v746, %v744
  %v987 = vpack.c.b16 %v747, %v745
  %v988 = vpack.c.b16 %v750, %v748
  %v989 = vpack.c.b16 %v751, %v749
  %v990 = vpack.c.b16 %v754, %v752
  %v991 = vpack.c.b16 %v755, %v753
  %v992 = vpack.c.b16 %v758, %v756
  %v993 = vpack.c.b16 %v759, %v757
  %v994 = vpack.c.b16 %v762, %v760
  %v995 = vpack.c.b16 %v763, %v761
  %v996 = vpack.c.b16 %v766, %v764
  %v997 = vpack.c.b16 %v767, %v765
  %v998 = vpack.c.b16 %v770, %v768
  %v999 = vpack.c.b16 %v771, %v769
  %v1000 = vpack.c.b16 %v774, %v772
  %v1001 = vpack.c.b16 %v775, %v773
  %v1002 = vpack.c.b16 %v778, %v776
  %v1003 = vpack.c.b16 %v779, %v777
  %v1004 = vpack.c.b16 %v782, %v780
  %v1005 = vpack.c.b16 %v783, %v781
  %v1006 = vpack.c.b16 %v786, %v784
  %v1007 = vpack.c.b16 %v787, %v785
  %v1008 = vpack.c.b16 %v790, %v788
  %v1009 = vpack.c.b16 %v791, %v789
  %v1010 = vpack.c.b16 %v794, %v792
  %v1011 = vpack.c.b16 %v795, %v793
  %v1012 = vpack.c.b16 %v798, %v796
  %v1013 = vpack.c.b16 %v799, %v797
  %v1014 = vpack.c.b16 %v802, %v800
  %v1015 = vpack.c.b16 %v803, %v801
  %v1016 = vpack.c.b16 %v806, %v804
  %v1017 = vpack.c.b16 %v807, %v805
  %v1018 = vpack.c.b16 %v810, %v808
  %v1019 = vpack.c.b16 %v811, %v809
  %v1020 = vpack.c.b16 %v814, %v812
  %v1021 = vpack.c.b16 %v815, %v813
  %v1022 = vpack.c.b16 %v818, %v816
  %v1023 = vpack.c.b16 %v819, %v817
  %v1024 = vpack.c.b16 %v822, %v820
  %v1025 = vpack.c.b16 %v823, %v821
  %v1026 = vpack.c.b16 %v826, %v824
  %v1027 = vpack.c.b16 %v827, %v825
  %v1028 = vpack.c.b16 %v830, %v828
  %v1029 = vpack.c.b16 %v831, %v829
  %v1030 = vpack.c.b16 %v834, %v832
  %v1031 = vpack.c.b16 %v835, %v833
  %v1032 = vpack.c.b16 %v838, %v836
  %v1033 = vpack.c.b16 %v839, %v837
  %v1034 = vpack.c.b16 %v842, %v840
  %v1035 = vpack.c.b16 %v843, %v841
  %v1036 = vpack.c.b16 %v846, %v844
  %v1037 = vpack.c.b16 %v847, %v845
  %v1038 = vpack.c.b16 %v850, %v848
  %v1039 = vpack.c.b16 %v851, %v849
  %v1040 = vpack.c.b16 %v854, %v852
  %v1041 = vpack.c.b16 %v855, %v853
  %v1042 = vpack.c.b16 %v858, %v856
  %v1043 = vpack.c.b16 %v859, %v857
  %v1044 = vpack.c.b16 %v862, %v860
  %v1045 = vpack.c.b16 %v863, %v861
  %v1046 = vpack.c.b16 %v866, %v864
  %v1047 = vpack.c.b16 %v867, %v865
  %v1048 = vpack.c.b16 %v870, %v868
  %v1049 = vpack.c.b16 %v871, %v869
  %v1050 = vpack.c.b16 %v874, %v872
  %v1051 = vpack.c.b16 %v875, %v873
  %1228 = vmatprep.subr.bf16.mxu0 %v877
  %1229 = vmatpush1.bf16.msra.mxu0 %v876
  %1230 = vmatprep.subr.bf16.mxu0 %v879
  %1231 = vmatpush1.bf16.msra.mxu0 %v878
  %1232 = vmatprep.subr.bf16.mxu0 %v881
  %1233 = vmatpush1.bf16.msra.mxu0 %v880
  %1234 = vmatprep.subr.bf16.mxu0 %v883
  %1235 = vmatpush1.bf16.msra.mxu0 %v882
  %1236 = vmatprep.subr.bf16.mxu0 %v885
  %1237 = vmatpush1.bf16.msra.mxu0 %v884
  %1238 = vmatprep.subr.bf16.mxu0 %v887
  %1239 = vmatpush1.bf16.msra.mxu0 %v886
  %1240 = vmatprep.subr.bf16.mxu0 %v889
  %1241 = vmatpush1.bf16.msra.mxu0 %v888
  %1242 = vmatprep.subr.bf16.mxu0 %v891
  %1243 = vmatpush1.bf16.msra.mxu0 %v890
  %1244 = vmatprep.subr.bf16.mxu0 %v893
  %1245 = vmatpush1.bf16.msra.mxu0 %v892
  %1246 = vmatprep.subr.bf16.mxu0 %v895
  %1247 = vmatpush1.bf16.msra.mxu0 %v894
  %1248 = vmatprep.subr.bf16.mxu0 %v897
  %1249 = vmatpush1.bf16.msra.mxu0 %v896
  %1250 = vmatprep.subr.bf16.mxu0 %v899
  %1251 = vmatpush1.bf16.msra.mxu0 %v898
  %1252 = vmatprep.subr.bf16.mxu0 %v901
  %1253 = vmatpush1.bf16.msra.mxu0 %v900
  %1254 = vmatprep.subr.bf16.mxu0 %v903
  %1255 = vmatpush1.bf16.msra.mxu0 %v902
  %1256 = vmatprep.subr.bf16.mxu0 %v905
  %1257 = vmatpush1.bf16.msra.mxu0 %v904
  %1258 = vmatprep.subr.bf16.mxu0 %v907
  %1259 = vmatpush1.bf16.msra.mxu0 %v906
  %1260 = vmatprep.mubr.bf16.mxu0 %v305
  %1261 = vmatmul.mubr.bf16.gmra.mrb[0].mxu0 %v304
  %v1262 = vpop.f32.mrb[0].mxu0
  %v1263 = vadd.f32 %v229, %v1262
  %v1264 = vpop.f32.mrb[0].mxu0
  %v1265 = vadd.f32 %v233, %v1264
  %v1266 = vpop.f32.mrb[0].mxu0
  %v1267 = vadd.f32 %v229, %v1266
  %v1268 = vpop.f32.mrb[0].mxu0
  %v1269 = vadd.f32 %v233, %v1268
  %1270 = vmatprep.mubr.bf16.mxu0 %v316
  %1271 = vmatmul.mubr.bf16.gmra.mrb[0].mxu0 %v315
  %v1272 = vpop.f32.mrb[0].mxu0
  %v1273 = vadd.f32 %v229, %v1272
  %v1274 = vpop.f32.mrb[0].mxu0
  %v1275 = vadd.f32 %v233, %v1274
  %v1276 = vpop.f32.mrb[0].mxu0
  %v1277 = vadd.f32 %v229, %v1276
  %v1278 = vpop.f32.mrb[0].mxu0
  %v1279 = vadd.f32 %v233, %v1278
  %1280 = vdwg.mxu0
  %1281 = vmatprep.subr.bf16.mxu0 %v909
  %1282 = vmatpush1.bf16.msra.mxu0 %v908
  %1283 = vmatprep.subr.bf16.mxu0 %v911
  %1284 = vmatpush1.bf16.msra.mxu0 %v910
  %1285 = vmatprep.subr.bf16.mxu0 %v913
  %1286 = vmatpush1.bf16.msra.mxu0 %v912
  %1287 = vmatprep.subr.bf16.mxu0 %v915
  %1288 = vmatpush1.bf16.msra.mxu0 %v914
  %1289 = vmatprep.subr.bf16.mxu0 %v917
  %1290 = vmatpush1.bf16.msra.mxu0 %v916
  %1291 = vmatprep.subr.bf16.mxu0 %v919
  %1292 = vmatpush1.bf16.msra.mxu0 %v918
  %1293 = vmatprep.subr.bf16.mxu0 %v921
  %1294 = vmatpush1.bf16.msra.mxu0 %v920
  %1295 = vmatprep.subr.bf16.mxu0 %v923
  %1296 = vmatpush1.bf16.msra.mxu0 %v922
  %1297 = vmatprep.subr.bf16.mxu0 %v925
  %1298 = vmatpush1.bf16.msra.mxu0 %v924
  %1299 = vmatprep.subr.bf16.mxu0 %v927
  %1300 = vmatpush1.bf16.msra.mxu0 %v926
  %1301 = vmatprep.subr.bf16.mxu0 %v929
  %1302 = vmatpush1.bf16.msra.mxu0 %v928
  %1303 = vmatprep.subr.bf16.mxu0 %v931
  %1304 = vmatpush1.bf16.msra.mxu0 %v930
  %1305 = vmatprep.subr.bf16.mxu0 %v933
  %1306 = vmatpush1.bf16.msra.mxu0 %v932
  %1307 = vmatprep.subr.bf16.mxu0 %v935
  %1308 = vmatpush1.bf16.msra.mxu0 %v934
  %1309 = vmatprep.subr.bf16.mxu0 %v937
  %1310 = vmatpush1.bf16.msra.mxu0 %v936
  %1311 = vmatprep.subr.bf16.mxu0 %v939
  %1312 = vmatpush1.bf16.msra.mxu0 %v938
  %1313 = vmatprep.mubr.bf16.mxu0 %v307
  %1314 = vmatmul.mubr.bf16.gmra.mrb[0].mxu0 %v306
  %v1315 = vpop.f32.mrb[0].mxu0
  %v1316 = vadd.f32 %v1263, %v1315
  %v1317 = vpop.f32.mrb[0].mxu0
  %v1318 = vadd.f32 %v1265, %v1317
  %v1319 = vpop.f32.mrb[0].mxu0
  %v1320 = vadd.f32 %v1267, %v1319
  %v1321 = vpop.f32.mrb[0].mxu0
  %v1322 = vadd.f32 %v1269, %v1321
  %1323 = vmatprep.mubr.bf16.mxu0 %v318
  %1324 = vmatmul.mubr.bf16.gmra.mrb[0].mxu0 %v317
  %v1325 = vpop.f32.mrb[0].mxu0
  %v1326 = vadd.f32 %v1273, %v1325
  %v1327 = vpop.f32.mrb[0].mxu0
  %v1328 = vadd.f32 %v1275, %v1327
  %v1329 = vpop.f32.mrb[0].mxu0
  %v1330 = vadd.f32 %v1277, %v1329
  %v1331 = vpop.f32.mrb[0].mxu0
  %v1332 = vadd.f32 %v1279, %v1331
  %1333 = vdwg.mxu0
  %1334 = vmatprep.subr.bf16.mxu0 %v941
  %1335 = vmatpush1.bf16.msra.mxu0 %v940
  %1336 = vmatprep.subr.bf16.mxu0 %v943
  %1337 = vmatpush1.bf16.msra.mxu0 %v942
  %1338 = vmatprep.subr.bf16.mxu0 %v945
  %1339 = vmatpush1.bf16.msra.mxu0 %v944
  %1340 = vmatprep.subr.bf16.mxu0 %v947
  %1341 = vmatpush1.bf16.msra.mxu0 %v946
  %1342 = vmatprep.subr.bf16.mxu0 %v949
  %1343 = vmatpush1.bf16.msra.mxu0 %v948
  %1344 = vmatprep.subr.bf16.mxu0 %v951
  %1345 = vmatpush1.bf16.msra.mxu0 %v950
  %1346 = vmatprep.subr.bf16.mxu0 %v953
  %1347 = vmatpush1.bf16.msra.mxu0 %v952
  %1348 = vmatprep.subr.bf16.mxu0 %v955
  %1349 = vmatpush1.bf16.msra.mxu0 %v954
  %1350 = vmatprep.subr.bf16.mxu0 %v957
  %1351 = vmatpush1.bf16.msra.mxu0 %v956
  %1352 = vmatprep.subr.bf16.mxu0 %v959
  %1353 = vmatpush1.bf16.msra.mxu0 %v958
  %1354 = vmatprep.subr.bf16.mxu0 %v961
  %1355 = vmatpush1.bf16.msra.mxu0 %v960
  %1356 = vmatprep.subr.bf16.mxu0 %v963
  %1357 = vmatpush1.bf16.msra.mxu0 %v962
  %1358 = vmatprep.subr.bf16.mxu0 %v965
  %1359 = vmatpush1.bf16.msra.mxu0 %v964
  %1360 = vmatprep.subr.bf16.mxu0 %v967
  %1361 = vmatpush1.bf16.msra.mxu0 %v966
  %1362 = vmatprep.subr.bf16.mxu0 %v969
  %1363 = vmatpush1.bf16.msra.mxu0 %v968
  %1364 = vmatprep.subr.bf16.mxu0 %v971
  %1365 = vmatpush1.bf16.msra.mxu0 %v970
  %1366 = vmatprep.mubr.bf16.mxu0 %v309
  %1367 = vmatmul.mubr.bf16.gmra.mrb[0].mxu0 %v308
  %v1368 = vpop.f32.mrb[0].mxu0
  %v1369 = vadd.f32 %v1316, %v1368
  %v1370 = vpop.f32.mrb[0].mxu0
  %v1371 = vadd.f32 %v1318, %v1370
  %v1372 = vpop.f32.mrb[0].mxu0
  %v1373 = vadd.f32 %v1320, %v1372
  %v1374 = vpop.f32.mrb[0].mxu0
  %v1375 = vadd.f32 %v1322, %v1374
  %1376 = vmatprep.mubr.bf16.mxu0 %v320
  %1377 = vmatmul.mubr.bf16.gmra.mrb[0].mxu0 %v319
  %v1378 = vpop.f32.mrb[0].mxu0
  %v1379 = vadd.f32 %v1326, %v1378
  %v1380 = vpop.f32.mrb[0].mxu0
  %v1381 = vadd.f32 %v1328, %v1380
  %v1382 = vpop.f32.mrb[0].mxu0
  %v1383 = vadd.f32 %v1330, %v1382
  %v1384 = vpop.f32.mrb[0].mxu0
  %v1385 = vadd.f32 %v1332, %v1384
  %1386 = vdwg.mxu0
  %1387 = vmatprep.subr.bf16.mxu0 %v973
  %1388 = vmatpush1.bf16.msra.mxu0 %v972
  %1389 = vmatprep.subr.bf16.mxu0 %v975
  %1390 = vmatpush1.bf16.msra.mxu0 %v974
  %1391 = vmatprep.subr.bf16.mxu0 %v977
  %1392 = vmatpush1.bf16.msra.mxu0 %v976
  %1393 = vmatprep.subr.bf16.mxu0 %v979
  %1394 = vmatpush1.bf16.msra.mxu0 %v978
  %1395 = vmatprep.subr.bf16.mxu0 %v981
  %1396 = vmatpush1.bf16.msra.mxu0 %v980
  %1397 = vmatprep.subr.bf16.mxu0 %v983
  %1398 = vmatpush1.bf16.msra.mxu0 %v982
  %1399 = vmatprep.subr.bf16.mxu0 %v985
  %1400 = vmatpush1.bf16.msra.mxu0 %v984
  %1401 = vmatprep.subr.bf16.mxu0 %v987
  %1402 = vmatpush1.bf16.msra.mxu0 %v986
  %1403 = vmatprep.subr.bf16.mxu0 %v989
  %1404 = vmatpush1.bf16.msra.mxu0 %v988
  %1405 = vmatprep.subr.bf16.mxu0 %v991
  %1406 = vmatpush1.bf16.msra.mxu0 %v990
  %1407 = vmatprep.subr.bf16.mxu0 %v993
  %1408 = vmatpush1.bf16.msra.mxu0 %v992
  %1409 = vmatprep.subr.bf16.mxu0 %v995
  %1410 = vmatpush1.bf16.msra.mxu0 %v994
  %1411 = vmatprep.subr.bf16.mxu0 %v997
  %1412 = vmatpush1.bf16.msra.mxu0 %v996
  %1413 = vmatprep.subr.bf16.mxu0 %v999
  %1414 = vmatpush1.bf16.msra.mxu0 %v998
  %1415 = vmatprep.subr.bf16.mxu0 %v1001
  %1416 = vmatpush1.bf16.msra.mxu0 %v1000
  %1417 = vmatprep.subr.bf16.mxu0 %v1003
  %1418 = vmatpush1.bf16.msra.mxu0 %v1002
  %1419 = vmatprep.mubr.bf16.mxu0 %v311
  %1420 = vmatmul.mubr.bf16.gmra.mrb[0].mxu0 %v310
  %v1421 = vpop.f32.mrb[0].mxu0
  %v1422 = vadd.f32 %v1369, %v1421
  %v1423 = vpop.f32.mrb[0].mxu0
  %v1424 = vadd.f32 %v1371, %v1423
  %v1425 = vpop.f32.mrb[0].mxu0
  %v1426 = vadd.f32 %v1373, %v1425
  %v1427 = vpop.f32.mrb[0].mxu0
  %v1428 = vadd.f32 %v1375, %v1427
  %1429 = vmatprep.mubr.bf16.mxu0 %v322
  %1430 = vmatmul.mubr.bf16.gmra.mrb[0].mxu0 %v321
  %v1431 = vpop.f32.mrb[0].mxu0
  %v1432 = vadd.f32 %v1379, %v1431
  %v1433 = vpop.f32.mrb[0].mxu0
  %v1434 = vadd.f32 %v1381, %v1433
  %v1435 = vpop.f32.mrb[0].mxu0
  %v1436 = vadd.f32 %v1383, %v1435
  %v1437 = vpop.f32.mrb[0].mxu0
  %v1438 = vadd.f32 %v1385, %v1437
  %1439 = vdwg.mxu0
  %1440 = vmatprep.subr.bf16.mxu0 %v1005
  %1441 = vmatpush1.bf16.msra.mxu0 %v1004
  %1442 = vmatprep.subr.bf16.mxu0 %v1007
  %1443 = vmatpush1.bf16.msra.mxu0 %v1006
  %1444 = vmatprep.subr.bf16.mxu0 %v1009
  %1445 = vmatpush1.bf16.msra.mxu0 %v1008
  %1446 = vmatprep.subr.bf16.mxu0 %v1011
  %1447 = vmatpush1.bf16.msra.mxu0 %v1010
  %1448 = vmatprep.subr.bf16.mxu0 %v1013
  %1449 = vmatpush1.bf16.msra.mxu0 %v1012
  %1450 = vmatprep.subr.bf16.mxu0 %v1015
  %1451 = vmatpush1.bf16.msra.mxu0 %v1014
  %1452 = vmatprep.subr.bf16.mxu0 %v1017
  %1453 = vmatpush1.bf16.msra.mxu0 %v1016
  %1454 = vmatprep.subr.bf16.mxu0 %v1019
  %1455 = vmatpush1.bf16.msra.mxu0 %v1018
  %1456 = vmatprep.subr.bf16.mxu0 %v1021
  %1457 = vmatpush1.bf16.msra.mxu0 %v1020
  %1458 = vmatprep.subr.bf16.mxu0 %v1023
  %1459 = vmatpush1.bf16.msra.mxu0 %v1022
  %1460 = vmatprep.subr.bf16.mxu0 %v1025
  %1461 = vmatpush1.bf16.msra.mxu0 %v1024
  %1462 = vmatprep.subr.bf16.mxu0 %v1027
  %1463 = vmatpush1.bf16.msra.mxu0 %v1026
  %1464 = vmatprep.subr.bf16.mxu0 %v1029
  %1465 = vmatpush1.bf16.msra.mxu0 %v1028
  %1466 = vmatprep.subr.bf16.mxu0 %v1031
  %1467 = vmatpush1.bf16.msra.mxu0 %v1030
  %1468 = vmatprep.subr.bf16.mxu0 %v1033
  %1469 = vmatpush1.bf16.msra.mxu0 %v1032
  %1470 = vmatprep.subr.bf16.mxu0 %v1035
  %1471 = vmatpush1.bf16.msra.mxu0 %v1034
  %1472 = vmatprep.mubr.bf16.mxu0 %v313
  %1473 = vmatmul.mubr.bf16.gmra.mrb[0].mxu0 %v312
  %v1474 = vpop.f32.mrb[0].mxu0
  %v1475 = vadd.f32 %v1422, %v1474
  %v1476 = vpop.f32.mrb[0].mxu0
  %v1477 = vadd.f32 %v1424, %v1476
  %v1478 = vpop.f32.mrb[0].mxu0
  %v1479 = vadd.f32 %v1426, %v1478
  %v1480 = vpop.f32.mrb[0].mxu0
  %v1481 = vadd.f32 %v1428, %v1480
  %1482 = vmatprep.mubr.bf16.mxu0 %v324
  %1483 = vmatmul.mubr.bf16.gmra.mrb[0].mxu0 %v323
  %v1484 = vpop.f32.mrb[0].mxu0
  %v1485 = vadd.f32 %v1432, %v1484
  %v1486 = vpop.f32.mrb[0].mxu0
  %v1487 = vadd.f32 %v1434, %v1486
  %v1488 = vpop.f32.mrb[0].mxu0
  %v1489 = vadd.f32 %v1436, %v1488
  %v1490 = vpop.f32.mrb[0].mxu0
  %v1491 = vadd.f32 %v1438, %v1490
  %1492 = vdwg.mxu0
  %1493 = vmatprep.subr.bf16.mxu0 %v1037
  %1494 = vmatpush1.bf16.msra.mxu0 %v1036
  %1495 = vmatprep.subr.bf16.mxu0 %v1039
  %1496 = vmatpush1.bf16.msra.mxu0 %v1038
  %1497 = vmatprep.subr.bf16.mxu0 %v1041
  %1498 = vmatpush1.bf16.msra.mxu0 %v1040
  %1499 = vmatprep.subr.bf16.mxu0 %v1043
  %1500 = vmatpush1.bf16.msra.mxu0 %v1042
  %1501 = vmatprep.subr.bf16.mxu0 %v1045
  %1502 = vmatpush1.bf16.msra.mxu0 %v1044
  %1503 = vmatprep.subr.bf16.mxu0 %v1047
  %1504 = vmatpush1.bf16.msra.mxu0 %v1046
  %1505 = vmatprep.subr.bf16.mxu0 %v1049
  %1506 = vmatpush1.bf16.msra.mxu0 %v1048
  %1507 = vmatprep.subr.bf16.mxu0 %v1051
  %1508 = vmatpush1.bf16.msra.mxu0 %v1050
  %1509 = vmatprep.subr.bf16.mxu0 0
  %1510 = vmatpush1.bf16.msra.mxu0 0
  %1511 = vmatprep.subr.bf16.mxu0 0
  %1512 = vmatpush1.bf16.msra.mxu0 0
  %1513 = vmatprep.subr.bf16.mxu0 0
  %1514 = vmatpush1.bf16.msra.mxu0 0
  %1515 = vmatprep.subr.bf16.mxu0 0
  %1516 = vmatpush1.bf16.msra.mxu0 0
  %1517 = vmatprep.subr.bf16.mxu0 0
  %1518 = vmatpush1.bf16.msra.mxu0 0
  %1519 = vmatprep.subr.bf16.mxu0 0
  %1520 = vmatpush1.bf16.msra.mxu0 0
  %1521 = vmatprep.subr.bf16.mxu0 0
  %1522 = vmatpush1.bf16.msra.mxu0 0
  %1523 = vmatprep.subr.bf16.mxu0 0
  %1524 = vmatpush1.bf16.msra.mxu0 0
  %1525 = vmatprep.mubr.bf16.mxu0 0
  %1526 = vmatmul.mubr.bf16.gmra.mrb[0].mxu0 %v314
  %v1527 = vpop.f32.mrb[0].mxu0
  %v1528 = vadd.f32 %v1475, %v1527
  %v1529 = vpop.f32.mrb[0].mxu0
  %v1530 = vadd.f32 %v1477, %v1529
  %v1531 = vpop.f32.mrb[0].mxu0
  %v1532 = vadd.f32 %v1479, %v1531
  %v1533 = vpop.f32.mrb[0].mxu0
  %v1534 = vadd.f32 %v1481, %v1533
  %1535 = vmatprep.mubr.bf16.mxu0 0
  %1536 = vmatmul.mubr.bf16.gmra.mrb[0].mxu0 %v325
  %v1537 = vpop.f32.mrb[0].mxu0
  %v1538 = vadd.f32 %v1485, %v1537
  %v1539 = vpop.f32.mrb[0].mxu0
  %v1540 = vadd.f32 %v1487, %v1539
  %v1541 = vpop.f32.mrb[0].mxu0
  %v1542 = vadd.f32 %v1489, %v1541
  %v1543 = vpop.f32.mrb[0].mxu0
  %v1544 = vadd.f32 %v1491, %v1543
  %1545 = vdwg.mxu0
  %v1546 = vld [vmem:[%s3] sm:$0xff]
  %v1547 = vld [vmem:[%s3 + $0x8] sm:$0xff]
  %v1548 = vld [vmem:[%s3 + $0x10] sm:$0xff]
  %v1549 = vld [vmem:[%s3 + $0x18] sm:$0xff]
  %v1550 = vld [vmem:[%s4] sm:$0xff]
  %v1551 = vld [vmem:[%s4 + $0x8] sm:$0xff]
  %v1552 = vld [vmem:[%s4 + $0x10] sm:$0xff]
  %v1553 = vld [vmem:[%s4 + $0x18] sm:$0xff]
  %v1554 = vld [vmem:[%s4 + $0x20] sm:$0xff]
  %v1555 = vld [vmem:[%s4 + $0x28] sm:$0xff]
  %v1556 = vld [vmem:[%s4 + $0x30] sm:$0xff]
  %v1557 = vld [vmem:[%s4 + $0x38] sm:$0xff]
  %v1558 = vld [vmem:[%s4 + $0x40] sm:$0xff]
  %v1559 = vld [vmem:[%s4 + $0x48] sm:$0xff]
  %v1560 = vld [vmem:[%s4 + $0x50] sm:$0xff]
  %v1561 = vld [vmem:[%s4 + $0x58] sm:$0xff]
  %v1562 = vld [vmem:[%s4 + $0x60] sm:$0xff]
  %v1563 = vld [vmem:[%s4 + $0x68] sm:$0xff]
  %v1564 = vld [vmem:[%s4 + $0x70] sm:$0xff]
  %v1565 = vld [vmem:[%s4 + $0x78] sm:$0xff]
  %v1566 = vld [vmem:[%s4 + $0x80] sm:$0xff]
  %v1567 = vld [vmem:[%s4 + $0x88] sm:$0xff]
  %v1568 = vld [vmem:[%s4 + $0x90] sm:$0xff]
  %v1569 = vld [vmem:[%s4 + $0x98] sm:$0xff]
  %v1570 = vld [vmem:[%s4 + $0xa0] sm:$0xff]
  %v1571 = vld [vmem:[%s4 + $0xa8] sm:$0xff]
  %v1572 = vld [vmem:[%s4 + $0xb0] sm:$0xff]
  %v1573 = vld [vmem:[%s4 + $0xb8] sm:$0xff]
  %v1574 = vld [vmem:[%s4 + $0xc0] sm:$0xff]
  %v1575 = vld [vmem:[%s4 + $0xc8] sm:$0xff]
  %v1576 = vld [vmem:[%s4 + $0xd0] sm:$0xff]
  %v1577 = vld [vmem:[%s4 + $0xd8] sm:$0xff]
  %v1578 = vld [vmem:[%s4 + $0xe0] sm:$0xff]
  %v1579 = vld [vmem:[%s4 + $0xe8] sm:$0xff]
  %v1580 = vld [vmem:[%s4 + $0xf0] sm:$0xff]
  %v1581 = vld [vmem:[%s4 + $0xf8] sm:$0xff]
  %v1582 = vld [vmem:[%s5] sm:$0xff]
  %v1583 = vld [vmem:[%s5 + $0x8] sm:$0xff]
  %v1584 = vld [vmem:[%s5 + $0x10] sm:$0xff]
  %v1585 = vld [vmem:[%s5 + $0x18] sm:$0xff]
  %v1586 = vld [vmem:[%s5 + $0x20] sm:$0xff]
  %v1587 = vld [vmem:[%s5 + $0x28] sm:$0xff]
  %v1588 = vld [vmem:[%s5 + $0x30] sm:$0xff]
  %v1589 = vld [vmem:[%s5 + $0x38] sm:$0xff]
  %v1590 = vld [vmem:[%s5 + $0x40] sm:$0xff]
  %v1591 = vld [vmem:[%s5 + $0x48] sm:$0xff]
  %v1592 = vld [vmem:[%s5 + $0x50] sm:$0xff]
  %v1593 = vld [vmem:[%s5 + $0x58] sm:$0xff]
  %v1594 = vld [vmem:[%s5 + $0x60] sm:$0xff]
  %v1595 = vld [vmem:[%s5 + $0x68] sm:$0xff]
  %v1596 = vld [vmem:[%s5 + $0x70] sm:$0xff]
  %v1597 = vld [vmem:[%s5 + $0x78] sm:$0xff]
  %v1598 = vld [vmem:[%s5 + $0x80] sm:$0xff]
  %v1599 = vld [vmem:[%s5 + $0x88] sm:$0xff]
  %v1600 = vld [vmem:[%s5 + $0x90] sm:$0xff]
  %v1601 = vld [vmem:[%s5 + $0x98] sm:$0xff]
  %v1602 = vld [vmem:[%s5 + $0xa0] sm:$0xff]
  %v1603 = vld [vmem:[%s5 + $0xa8] sm:$0xff]
  %v1604 = vld [vmem:[%s5 + $0xb0] sm:$0xff]
  %v1605 = vld [vmem:[%s5 + $0xb8] sm:$0xff]
  %v1606 = vld [vmem:[%s5 + $0xc0] sm:$0xff]
  %v1607 = vld [vmem:[%s5 + $0xc8] sm:$0xff]
  %v1608 = vld [vmem:[%s5 + $0xd0] sm:$0xff]
  %v1609 = vld [vmem:[%s5 + $0xd8] sm:$0xff]
  %v1610 = vld [vmem:[%s5 + $0xe0] sm:$0xff]
  %v1611 = vld [vmem:[%s5 + $0xe8] sm:$0xff]
  %v1612 = vld [vmem:[%s5 + $0xf0] sm:$0xff]
  %v1613 = vld [vmem:[%s5 + $0xf8] sm:$0xff]
  %v1614 = vmul.f32 %v1528, %v1528
  %v1615 = vmul.f32 %v1530, %v1530
  %v1616 = vmul.f32 %v1532, %v1532
  %v1617 = vmul.f32 %v1534, %v1534
  %v1618 = vmul.f32 %v1538, %v1538
  %v1619 = vmul.f32 %v1540, %v1540
  %v1620 = vmul.f32 %v1542, %v1542
  %v1621 = vmul.f32 %v1544, %v1544
  %1622 = vmatprep.subr.mxu0 0.0
  %1623 = vmatpush1.msra.mxu0 %v1550
  %1624 = vmatprep.subr.mxu0 0.0
  %1625 = vmatpush1.msra.mxu0 %v1551
  %1626 = vmatprep.subr.mxu0 0.0
  %1627 = vmatpush1.msra.mxu0 %v1552
  %1628 = vmatprep.subr.mxu0 0.0
  %1629 = vmatpush1.msra.mxu0 %v1553
  %1630 = vmatprep.subr.mxu0 0.0
  %1631 = vmatpush1.msra.mxu0 %v1554
  %1632 = vmatprep.subr.mxu0 0.0
  %1633 = vmatpush1.msra.mxu0 %v1555
  %1634 = vmatprep.subr.mxu0 0.0
  %1635 = vmatpush1.msra.mxu0 %v1556
  %1636 = vmatprep.subr.mxu0 0.0
  %1637 = vmatpush1.msra.mxu0 %v1557
  %1638 = vmatprep.subr.mxu0 0.0
  %1639 = vmatpush1.msra.mxu0 %v1558
  %1640 = vmatprep.subr.mxu0 0.0
  %1641 = vmatpush1.msra.mxu0 %v1559
  %1642 = vmatprep.subr.mxu0 0.0
  %1643 = vmatpush1.msra.mxu0 %v1560
  %1644 = vmatprep.subr.mxu0 0.0
  %1645 = vmatpush1.msra.mxu0 %v1561
  %1646 = vmatprep.subr.mxu0 0.0
  %1647 = vmatpush1.msra.mxu0 %v1562
  %1648 = vmatprep.subr.mxu0 0.0
  %1649 = vmatpush1.msra.mxu0 %v1563
  %1650 = vmatprep.subr.mxu0 0.0
  %1651 = vmatpush1.msra.mxu0 %v1564
  %1652 = vmatprep.subr.mxu0 0.0
  %1653 = vmatpush1.msra.mxu0 %v1565
  %1654 = vmatprep.subr.mxu0 0.0
  %1655 = vmatpush1.msra.mxu0 %v1566
  %1656 = vmatprep.subr.mxu0 0.0
  %1657 = vmatpush1.msra.mxu0 %v1567
  %1658 = vmatprep.subr.mxu0 0.0
  %1659 = vmatpush1.msra.mxu0 %v1568
  %1660 = vmatprep.subr.mxu0 0.0
  %1661 = vmatpush1.msra.mxu0 %v1569
  %1662 = vmatprep.subr.mxu0 0.0
  %1663 = vmatpush1.msra.mxu0 %v1570
  %1664 = vmatprep.subr.mxu0 0.0
  %1665 = vmatpush1.msra.mxu0 %v1571
  %1666 = vmatprep.subr.mxu0 0.0
  %1667 = vmatpush1.msra.mxu0 %v1572
  %1668 = vmatprep.subr.mxu0 0.0
  %1669 = vmatpush1.msra.mxu0 %v1573
  %1670 = vmatprep.subr.mxu0 0.0
  %1671 = vmatpush1.msra.mxu0 %v1574
  %1672 = vmatprep.subr.mxu0 0.0
  %1673 = vmatpush1.msra.mxu0 %v1575
  %1674 = vmatprep.subr.mxu0 0.0
  %1675 = vmatpush1.msra.mxu0 %v1576
  %1676 = vmatprep.subr.mxu0 0.0
  %1677 = vmatpush1.msra.mxu0 %v1577
  %1678 = vmatprep.subr.mxu0 0.0
  %1679 = vmatpush1.msra.mxu0 %v1578
  %1680 = vmatprep.subr.mxu0 0.0
  %1681 = vmatpush1.msra.mxu0 %v1579
  %1682 = vmatprep.subr.mxu0 0.0
  %1683 = vmatpush1.msra.mxu0 %v1580
  %1684 = vmatprep.subr.mxu0 0.0
  %1685 = vmatpush1.msra.mxu0 %v1581
  %1686 = vmatprep.mubr.f32.mxu0 %v1615
  %1687 = vmatmul.mubr.f32.gmra.mrb[0].mxu0 %v1614
  %v1688 = vpop.f32.mrb[0].mxu0
  %v1689 = vadd.f32 0.0, %v1688
  %v1690 = vpop.f32.mrb[0].mxu0
  %1691 = vmatprep.mubr.f32.mxu0 %v1617
  %1692 = vmatmul.mubr.f32.gmra.mrb[0].mxu0 %v1616
  %v1693 = vpop.f32.mrb[0].mxu0
  %v1694 = vadd.f32 0.0, %v1693
  %v1695 = vpop.f32.mrb[0].mxu0
  %1696 = vmatprep.mubr.f32.mxu0 %v1619
  %1697 = vmatmul.mubr.f32.gmra.mrb[0].mxu0 %v1618
  %v1698 = vpop.f32.mrb[0].mxu0
  %v1699 = vadd.f32 0.0, %v1698
  %v1700 = vpop.f32.mrb[0].mxu0
  %1701 = vmatprep.mubr.f32.mxu0 %v1621
  %1702 = vmatmul.mubr.f32.gmra.mrb[0].mxu0 %v1620
  %v1703 = vpop.f32.mrb[0].mxu0
  %v1704 = vadd.f32 0.0, %v1703
  %v1705 = vpop.f32.mrb[0].mxu0
  %1706 = vdwg.mxu0
  %vm1707 = vcmask 261120
  %v1709 = vsel %vm1707, %v1546, 0
  %v1712 = vsel %vm1707, %v1547, 0
  %v1715 = vsel %vm1707, %v1548, 0
  %v1718 = vsel %vm1707, %v1549, 0
  %1720 = vmatprep.subr.mxu0 0.0
  %1721 = vmatpush1.msra.mxu0 %v1689
  %1722 = vmatprep.subr.mxu0 0.0
  %1723 = vmatpush1.msra.mxu0 %v1694
  %1724 = vmatprep.subr.mxu0 0.0
  %1725 = vmatpush1.msra.mxu0 %v1699
  %1726 = vmatprep.subr.mxu0 0.0
  %1727 = vmatpush1.msra.mxu0 %v1704
  %1728 = vmatprep.subr.mxu0 0.0
  %1729 = vmatpush1.msra.mxu0 0.0
  %1730 = vmatprep.subr.mxu0 0.0
  %1731 = vmatpush1.msra.mxu0 0.0
  %1732 = vmatprep.subr.mxu0 0.0
  %1733 = vmatpush1.msra.mxu0 0.0
  %1734 = vmatprep.subr.mxu0 0.0
  %1735 = vmatpush1.msra.mxu0 0.0
  %1736 = vmatprep.subr.mxu0 0.0
  %1737 = vmatpush1.msra.mxu0 0.0
  %1738 = vmatprep.subr.mxu0 0.0
  %1739 = vmatpush1.msra.mxu0 0.0
  %1740 = vmatprep.subr.mxu0 0.0
  %1741 = vmatpush1.msra.mxu0 0.0
  %1742 = vmatprep.subr.mxu0 0.0
  %1743 = vmatpush1.msra.mxu0 0.0
  %1744 = vmatprep.subr.mxu0 0.0
  %1745 = vmatpush1.msra.mxu0 0.0
  %1746 = vmatprep.subr.mxu0 0.0
  %1747 = vmatpush1.msra.mxu0 0.0
  %1748 = vmatprep.subr.mxu0 0.0
  %1749 = vmatpush1.msra.mxu0 0.0
  %1750 = vmatprep.subr.mxu0 0.0
  %1751 = vmatpush1.msra.mxu0 0.0
  %1752 = vmatprep.subr.mxu0 0.0
  %1753 = vmatpush1.msra.mxu0 0.0
  %1754 = vmatprep.subr.mxu0 0.0
  %1755 = vmatpush1.msra.mxu0 0.0
  %1756 = vmatprep.subr.mxu0 0.0
  %1757 = vmatpush1.msra.mxu0 0.0
  %1758 = vmatprep.subr.mxu0 0.0
  %1759 = vmatpush1.msra.mxu0 0.0
  %1760 = vmatprep.subr.mxu0 0.0
  %1761 = vmatpush1.msra.mxu0 0.0
  %1762 = vmatprep.subr.mxu0 0.0
  %1763 = vmatpush1.msra.mxu0 0.0
  %1764 = vmatprep.subr.mxu0 0.0
  %1765 = vmatpush1.msra.mxu0 0.0
  %1766 = vmatprep.subr.mxu0 0.0
  %1767 = vmatpush1.msra.mxu0 0.0
  %1768 = vmatprep.subr.mxu0 0.0
  %1769 = vmatpush1.msra.mxu0 0.0
  %1770 = vmatprep.subr.mxu0 0.0
  %1771 = vmatpush1.msra.mxu0 0.0
  %1772 = vmatprep.subr.mxu0 0.0
  %1773 = vmatpush1.msra.mxu0 0.0
  %1774 = vmatprep.subr.mxu0 0.0
  %1775 = vmatpush1.msra.mxu0 0.0
  %1776 = vmatprep.subr.mxu0 0.0
  %1777 = vmatpush1.msra.mxu0 0.0
  %1778 = vmatprep.subr.mxu0 0.0
  %1779 = vmatpush1.msra.mxu0 0.0
  %1780 = vmatprep.subr.mxu0 0.0
  %1781 = vmatpush1.msra.mxu0 0.0
  %1782 = vmatprep.subr.mxu0 0.0
  %1783 = vmatpush1.msra.mxu0 0.0
  %1784 = vmatprep.mubr.f32.mxu0 0.0
  %1785 = vmatmul.mubr.f32.gmra.mrb[0].mxu0 %v1709
  %v1786 = vpop.f32.mrb[0].mxu0
  %v1787 = vadd.f32 0.0, %v1786
  %v1788 = vpop.f32.mrb[0].mxu0
  %1789 = vmatprep.mubr.f32.mxu0 0.0
  %1790 = vmatmul.mubr.f32.gmra.mrb[0].mxu0 %v1712
  %v1791 = vpop.f32.mrb[0].mxu0
  %v1792 = vadd.f32 0.0, %v1791
  %v1793 = vpop.f32.mrb[0].mxu0
  %1794 = vmatprep.mubr.f32.mxu0 0.0
  %1795 = vmatmul.mubr.f32.gmra.mrb[0].mxu0 %v1715
  %v1796 = vpop.f32.mrb[0].mxu0
  %v1797 = vadd.f32 0.0, %v1796
  %v1798 = vpop.f32.mrb[0].mxu0
  %1799 = vmatprep.mubr.f32.mxu0 0.0
  %1800 = vmatmul.mubr.f32.gmra.mrb[0].mxu0 %v1718
  %v1801 = vpop.f32.mrb[0].mxu0
  %v1802 = vadd.f32 0.0, %v1801
  %v1803 = vpop.f32.mrb[0].mxu0
  %1804 = vdwg.mxu0
  %v1805 = vadd.f32 %v1787, 1e-08
  %v1806 = vadd.f32 %v1792, 1e-08
  %v1807 = vadd.f32 %v1797, 1e-08
  %v1808 = vadd.f32 %v1802, 1e-08
  %v1809 = vrsqrt.pop %v1805
  %v1810 = vrsqrt.pop %v1806
  %v1811 = vrsqrt.pop %v1807
  %v1812 = vrsqrt.pop %v1808
  %v1813 = vmul.f32 %v1787, %v1809
  %v1814 = vmul.f32 %v1792, %v1810
  %v1815 = vmul.f32 %v1797, %v1811
  %v1816 = vmul.f32 %v1802, %v1812
  %v1817 = vadd.f32 %v1787, 1.0
  %v1818 = vadd.f32 %v1792, 1.0
  %v1819 = vadd.f32 %v1797, 1.0
  %v1820 = vadd.f32 %v1802, 1.0
  %v1821 = vrcp.pop %v1817
  %v1822 = vrcp.pop %v1818
  %v1823 = vrcp.pop %v1819
  %v1824 = vrcp.pop %v1820
  %v1825 = vmul.f32 %v1813, %v1821
  %v1826 = vmul.f32 %v1814, %v1822
  %v1827 = vmul.f32 %v1815, %v1823
  %v1828 = vmul.f32 %v1816, %v1824
  %1829 = vmatprep.subr.mxu0 %v1583
  %1830 = vmatpush1.msra.mxu0 %v1582
  %1831 = vmatprep.subr.mxu0 %v1585
  %1832 = vmatpush1.msra.mxu0 %v1584
  %1833 = vmatprep.subr.mxu0 %v1587
  %1834 = vmatpush1.msra.mxu0 %v1586
  %1835 = vmatprep.subr.mxu0 %v1589
  %1836 = vmatpush1.msra.mxu0 %v1588
  %1837 = vmatprep.subr.mxu0 %v1591
  %1838 = vmatpush1.msra.mxu0 %v1590
  %1839 = vmatprep.subr.mxu0 %v1593
  %1840 = vmatpush1.msra.mxu0 %v1592
  %1841 = vmatprep.subr.mxu0 %v1595
  %1842 = vmatpush1.msra.mxu0 %v1594
  %1843 = vmatprep.subr.mxu0 %v1597
  %1844 = vmatpush1.msra.mxu0 %v1596
  %1845 = vmatprep.subr.mxu0 %v1599
  %1846 = vmatpush1.msra.mxu0 %v1598
  %1847 = vmatprep.subr.mxu0 %v1601
  %1848 = vmatpush1.msra.mxu0 %v1600
  %1849 = vmatprep.subr.mxu0 %v1603
  %1850 = vmatpush1.msra.mxu0 %v1602
  %1851 = vmatprep.subr.mxu0 %v1605
  %1852 = vmatpush1.msra.mxu0 %v1604
  %1853 = vmatprep.subr.mxu0 %v1607
  %1854 = vmatpush1.msra.mxu0 %v1606
  %1855 = vmatprep.subr.mxu0 %v1609
  %1856 = vmatpush1.msra.mxu0 %v1608
  %1857 = vmatprep.subr.mxu0 %v1611
  %1858 = vmatpush1.msra.mxu0 %v1610
  %1859 = vmatprep.subr.mxu0 %v1613
  %1860 = vmatpush1.msra.mxu0 %v1612
  %1861 = vmatprep.subr.mxu0 0.0
  %1862 = vmatpush1.msra.mxu0 0.0
  %1863 = vmatprep.subr.mxu0 0.0
  %1864 = vmatpush1.msra.mxu0 0.0
  %1865 = vmatprep.subr.mxu0 0.0
  %1866 = vmatpush1.msra.mxu0 0.0
  %1867 = vmatprep.subr.mxu0 0.0
  %1868 = vmatpush1.msra.mxu0 0.0
  %1869 = vmatprep.subr.mxu0 0.0
  %1870 = vmatpush1.msra.mxu0 0.0
  %1871 = vmatprep.subr.mxu0 0.0
  %1872 = vmatpush1.msra.mxu0 0.0
  %1873 = vmatprep.subr.mxu0 0.0
  %1874 = vmatpush1.msra.mxu0 0.0
  %1875 = vmatprep.subr.mxu0 0.0
  %1876 = vmatpush1.msra.mxu0 0.0
  %1877 = vmatprep.subr.mxu0 0.0
  %1878 = vmatpush1.msra.mxu0 0.0
  %1879 = vmatprep.subr.mxu0 0.0
  %1880 = vmatpush1.msra.mxu0 0.0
  %1881 = vmatprep.subr.mxu0 0.0
  %1882 = vmatpush1.msra.mxu0 0.0
  %1883 = vmatprep.subr.mxu0 0.0
  %1884 = vmatpush1.msra.mxu0 0.0
  %1885 = vmatprep.subr.mxu0 0.0
  %1886 = vmatpush1.msra.mxu0 0.0
  %1887 = vmatprep.subr.mxu0 0.0
  %1888 = vmatpush1.msra.mxu0 0.0
  %1889 = vmatprep.subr.mxu0 0.0
  %1890 = vmatpush1.msra.mxu0 0.0
  %1891 = vmatprep.subr.mxu0 0.0
  %1892 = vmatpush1.msra.mxu0 0.0
  %1893 = vmatprep.mubr.f32.mxu0 0.0
  %1894 = vmatmul.mubr.f32.gmra.mrb[0].mxu0 %v1825
  %v1895 = vpop.f32.mrb[0].mxu0
  %v1896 = vadd.f32 0.0, %v1895
  %v1897 = vpop.f32.mrb[0].mxu0
  %v1898 = vadd.f32 0.0, %v1897
  %1899 = vmatprep.mubr.f32.mxu0 0.0
  %1900 = vmatmul.mubr.f32.gmra.mrb[0].mxu0 %v1826
  %v1901 = vpop.f32.mrb[0].mxu0
  %v1902 = vadd.f32 0.0, %v1901
  %v1903 = vpop.f32.mrb[0].mxu0
  %v1904 = vadd.f32 0.0, %v1903
  %1905 = vmatprep.mubr.f32.mxu0 0.0
  %1906 = vmatmul.mubr.f32.gmra.mrb[0].mxu0 %v1827
  %v1907 = vpop.f32.mrb[0].mxu0
  %v1908 = vadd.f32 0.0, %v1907
  %v1909 = vpop.f32.mrb[0].mxu0
  %v1910 = vadd.f32 0.0, %v1909
  %1911 = vmatprep.mubr.f32.mxu0 0.0
  %1912 = vmatmul.mubr.f32.gmra.mrb[0].mxu0 %v1828
  %v1913 = vpop.f32.mrb[0].mxu0
  %v1914 = vadd.f32 0.0, %v1913
  %v1915 = vpop.f32.mrb[0].mxu0
  %v1916 = vadd.f32 0.0, %v1915
  %1917 = vdwg.mxu0
  %v1918 = vmul.f32 %v1528, %v1896
  %v1919 = vmul.f32 %v1530, %v1898
  %v1920 = vmul.f32 %v1532, %v1902
  %v1921 = vmul.f32 %v1534, %v1904
  %v1922 = vmul.f32 %v1538, %v1908
  %v1923 = vmul.f32 %v1540, %v1910
  %v1924 = vmul.f32 %v1542, %v1914
  %v1925 = vmul.f32 %v1544, %v1916
  %1926 = vst [vmem:[%s6] sm:$0xff] %v1918
  %1927 = vst [vmem:[%s6 + $0x8] sm:$0xff] %v1919
  %1928 = vst [vmem:[%s6 + $0x10] sm:$0xff] %v1920
  %1929 = vst [vmem:[%s6 + $0x18] sm:$0xff] %v1921
  %1930 = vst [vmem:[%s6 + $0x20] sm:$0xff] %v1922
  %1931 = vst [vmem:[%s6 + $0x28] sm:$0xff] %v1923
  %1932 = vst [vmem:[%s6 + $0x30] sm:$0xff] %v1924
  %1933 = vst [vmem:[%s6 + $0x38] sm:$0xff] %v1925
  // Predicated region
  $region26: #{primary_caps_forward.1} parent=0 // pred_check
    _
  $region27: #{primary_caps_forward.1} parent=0 // pred_check_branch
    %1935 = sbr.rel (0) target = $region29
  $region28: #{primary_caps_forward.1} parent=0 // pred_region
    _
  $region29: #{primary_caps_forward.1} parent=0 // pred_fallthru
    _
  // Predicated region
  $region30: #{primary_caps_forward.1} parent=0 // pred_check
    _
  $region31: #{primary_caps_forward.1} parent=0 // pred_check_branch
    %1937 = sbr.rel (0) target = $region33
  $region32: #{primary_caps_forward.1} parent=0 // pred_region
    _
  $region33: #{primary_caps_forward.1} parent=0 // pred_fallthru
    _

</llo_original>
